<compile_context>
chip_gen: v5e
topology: v5e:2x2
jax: 0.10.0
libtpu: 0.0.40
codegen_flags: <defaults>
</compile_context>

<pallas_src>
import jax
import jax.numpy as jnp
from jax import lax
from jax.experimental import pallas as pl
from jax.experimental.pallas import tpu as pltpu


def _layer_norm(z, g, b, eps=1e-5):
    mu = jnp.mean(z, axis=-1, keepdims=True)
    var = jnp.mean(jnp.square(z - mu), axis=-1, keepdims=True)
    return (z - mu) * lax.rsqrt(var + eps) * g + b


# --------------------------------------------------------------------------
# Kernel 1: alignment attention + gates + FFN (per batch-block)
# --------------------------------------------------------------------------
def decoder_state_kernel(
    # data blocks
    outs_ref, mem_ref, mask_ref, bias_ref,
    # alignment attention params (scale folded into wq/bq in the wrapper)
    wq_ref, wk_ref, wv_ref, bq_ref, bk_ref, bv_ref, wo_ref, bo_ref,
    # alignment layer norm
    lna_g_ref, lna_b_ref,
    # diverter as a single logit-difference projection (sigmoid gate)
    wdx_ref, wda_ref, bdd_ref,
    # feed-forward
    w1_ref, b1_ref, w2_ref, b2_ref,
    # ff layer norm
    lnf_g_ref, lnf_b_ref,
    # outputs
    h_ref, gen_ref, cprobs_ref,
):
    f32 = jnp.float32
    pd = wq_ref.dtype                      # bf16 (or f32) matmul operand dtype

    x = outs_ref[...]                      # (Bb, T, E) f32
    mem = mem_ref[...]                     # (Bb, S, E) f32
    Bb, T, E = x.shape
    S = mem.shape[1]

    # Flatten the batch block into the MXU M dimension for all shared matmuls.
    x2 = x.reshape(Bb * T, E)
    m2 = mem.reshape(Bb * S, E)

    q = jnp.dot(x2.astype(pd), wq_ref[...], preferred_element_type=f32) + bq_ref[...]
    k = jnp.dot(m2.astype(pd), wk_ref[...], preferred_element_type=f32) + bk_ref[...]
    v = jnp.dot(m2.astype(pd), wv_ref[...], preferred_element_type=f32) + bv_ref[...]

    qb = q.reshape(Bb, T, E)
    kb = k.reshape(Bb, S, E)
    vb = v.reshape(Bb, S, E)

    # ---- single-head alignment attention (per batch element, f32) ----
    scores = jnp.einsum("bte,bse->bts", qb, kb, preferred_element_type=f32)
    scores = scores + bias_ref[...]                        # (Bb,1,1) broadcast
    keep = mask_ref[...] > 0.5                             # (Bb,1,S) broadcast
    scores = jnp.where(keep, scores, -1e30)                # finite fill (no NaN rows)

    smax = jnp.max(scores, axis=-1, keepdims=True)
    sexp = jnp.exp(scores - smax)
    align = sexp / jnp.sum(sexp, axis=-1, keepdims=True)   # (Bb,T,S)

    ctx = jnp.einsum("bts,bse->bte", align, vb, preferred_element_type=f32)
    attn = (jnp.dot(ctx.reshape(Bb * T, E).astype(pd), wo_ref[...],
                    preferred_element_type=f32) + bo_ref[...])   # (Bb*T, E)

    # ---- gates: sigmoid of the diverter logit difference (== 2-way softmax) ----
    attn_norm = _layer_norm(attn, lna_g_ref[...], lna_b_ref[...])
    diff = (jnp.sum(x2 * wdx_ref[...], axis=-1, keepdims=True)
            + jnp.sum(attn_norm * wda_ref[...], axis=-1, keepdims=True)
            + bdd_ref[...])                                 # (Bb*T, 1)
    gen_gate = 1.0 / (1.0 + jnp.exp(-diff))
    copy_gate = 1.0 - gen_gate

    # ---- residual + FFN branch ----
    h = _layer_norm(x2 + attn, lna_g_ref[...], lna_b_ref[...])
    h = jnp.maximum(
        jnp.dot(h.astype(pd), w1_ref[...], preferred_element_type=f32) + b1_ref[...],
        0.0)
    h = jnp.dot(h.astype(pd), w2_ref[...], preferred_element_type=f32) + b2_ref[...]
    h = _layer_norm(h, lnf_g_ref[...], lnf_b_ref[...])

    h_ref[...] = h.reshape(Bb, T, E).astype(h_ref.dtype)
    gen_ref[...] = gen_gate.reshape(Bb, T, 1)
    cprobs_ref[...] = copy_gate.reshape(Bb, T, 1) * align   # copy path stays f32


# --------------------------------------------------------------------------
# Kernel 2: logsumexp of output logits, accumulated over vocab tiles
# --------------------------------------------------------------------------
def vocab_lse_kernel(h_ref, wout_ref, lse_ref, m_scr, s_scr):
    f32 = jnp.float32
    Bb, T, E = h_ref.shape
    vt = pl.program_id(1)
    nv = pl.num_programs(1)

    @pl.when(vt == 0)
    def _():
        m_scr[...] = jnp.full_like(m_scr, -jnp.inf)
        s_scr[...] = jnp.zeros_like(s_scr)

    h2 = h_ref[...].reshape(Bb * T, E)
    logits = jnp.dot(h2, wout_ref[...], preferred_element_type=f32)   # (Bb*T, TV)

    m_prev = m_scr[...]
    m_new = jnp.maximum(m_prev, jnp.max(logits, axis=-1, keepdims=True))
    s_scr[...] = (s_scr[...] * jnp.exp(m_prev - m_new)
                  + jnp.sum(jnp.exp(logits - m_new), axis=-1, keepdims=True))
    m_scr[...] = m_new

    @pl.when(vt == nv - 1)
    def _():
        lse_ref[...] = (m_scr[...] + jnp.log(s_scr[...])).reshape(Bb, T, 1)


# --------------------------------------------------------------------------
# Kernel 3: per-vocab-tile probabilities (generation softmax + copy scatter_add)
# --------------------------------------------------------------------------
def vocab_output_kernel(h_ref, lse_ref, gen_ref, cprobs_ref, cseq_ref, wout_ref,
                        out_ref):
    f32 = jnp.float32
    Bb, T, E = h_ref.shape
    TV = wout_ref.shape[1]
    S = cprobs_ref.shape[2]
    v_off = pl.program_id(1) * TV

    h2 = h_ref[...].reshape(Bb * T, E)
    logits = jnp.dot(h2, wout_ref[...],
                     preferred_element_type=f32).reshape(Bb, T, TV)

    # generation path, normalized by the precomputed logsumexp over the full V
    gen_probs = gen_ref[...] * jnp.exp(logits - lse_ref[...])         # (Bb,T,TV)

    # copy path: scatter_add over this vocab tile only, as an f32 one-hot matmul.
    # copy_seq arrives lane-major (Bb,1,S); the one-hot is built as (Bb,TV,S) so
    # no in-kernel transpose of the ids is needed.
    ids = cseq_ref[...]                                               # (Bb,1,S) int32
    iota = lax.broadcasted_iota(jnp.int32, (Bb, TV, S), 1) + v_off    # (Bb,TV,S)
    onehot = (iota == ids).astype(f32)                                # (Bb,TV,S)
    copy_probs = lax.dot_general(
        cprobs_ref[...], onehot,
        dimension_numbers=(((2,), (2,)), ((0,), (0,))),
        preferred_element_type=f32)                                   # (Bb,T,TV)

    out_ref[...] = jnp.log(gen_probs + copy_probs + 1e-12)


# --------------------------------------------------------------------------
# Wrapper
# --------------------------------------------------------------------------
def copy_token_decoder(outs, mem, mem_mask, mem_bias, copy_seq, params,
                       *, param_dtype=jnp.bfloat16, block_b=None, tile_v=None):
    """outs: (T,B,E)  mem: (S,B,E)  mem_mask: (S,B) bool (True = keep)
    mem_bias: (B,1)  copy_seq: (S,B) int  ->  lprobs (T,B,V)"""
    T, B, E = outs.shape
    S = mem.shape[0]
    V = params["wout"].shape[0]
    F = params["w1"].shape[0]
    f32 = jnp.float32

    # ---- tile selection ----
    if block_b is None:
        block_b = max(1, min(B, 128 // max(T, 1)))   # aim for Bb*T >= 128 MXU rows
    while B % block_b:
        block_b -= 1
    Bb = block_b
    nb = B // Bb

    if tile_v is None:                               # largest 128-multiple <=1024 dividing V
        tile_v = V
        for cand in range(1024, 127, -128):
            if V % cand == 0:
                tile_v = cand
                break
    assert V % tile_v == 0, "vocab tiling requires V % tile_v == 0 (pad V)"
    TV = tile_v
    nv = V // TV

    # ---- batch-major data (kernel is batch-major; PyTorch is seq-major) ----
    outs_b = jnp.transpose(outs, (1, 0, 2)).astype(f32)                     # (B,T,E)
    mem_b = jnp.transpose(mem, (1, 0, 2)).astype(f32)                       # (B,S,E)
    mask_b = jnp.transpose(mem_mask, (1, 0)).astype(f32)[:, None, :]        # (B,1,S)
    bias_b = mem_bias.reshape(B, 1, 1).astype(f32)                          # (B,1,1)
    cseq_b = jnp.transpose(copy_seq, (1, 0)).astype(jnp.int32)[:, None, :]  # (B,1,S)

    # ---- weight prep (host-side, one time): bf16 for large matmul operands,
    #      f32 for biases / LN params / diverter; attention scale folded into Wq/bq.
    scale = float(E) ** (-0.5)
    pw = lambda a: a.astype(param_dtype)

    wq = pw(params["in_proj_w"][0 * E:1 * E].T * scale)
    bq = (params["in_proj_b"][0 * E:1 * E] * scale)[None, :].astype(f32)
    wk = pw(params["in_proj_w"][1 * E:2 * E].T)
    bk = params["in_proj_b"][1 * E:2 * E][None, :].astype(f32)
    wv = pw(params["in_proj_w"][2 * E:3 * E].T)
    bv = params["in_proj_b"][2 * E:3 * E][None, :].astype(f32)
    wo = pw(params["out_proj_w"].T)
    bo = params["out_proj_b"][None, :].astype(f32)
    lna_g = params["ln_a_g"][None, :].astype(f32)
    lna_b = params["ln_a_b"][None, :].astype(f32)
    dw, db = params["diverter_w"], params["diverter_b"]
    wdx = (dw[0, :E] - dw[1, :E])[None, :].astype(f32)    # (1,E) gen-copy logit diff
    wda = (dw[0, E:] - dw[1, E:])[None, :].astype(f32)    # (1,E)
    bdd = (db[0] - db[1]).reshape(1, 1).astype(f32)       # (1,1)
    w1 = pw(params["w1"].T)
    b1 = params["b1"][None, :].astype(f32)
    w2 = pw(params["w2"].T)
    b2 = params["b2"][None, :].astype(f32)
    lnf_g = params["ln_f_g"][None, :].astype(f32)
    lnf_b = params["ln_f_b"][None, :].astype(f32)
    wout = pw(params["wout"].T)                           # (E,V)

    # NOTE: constant-index weight blocks could use pipeline_mode=pl.Buffered(1)
    # to halve their VMEM; wout (the big one) is already V-tiled so the default
    # double buffering is kept for the small weights.
    blk3 = lambda shp: pl.BlockSpec(shp, lambda b: (b, 0, 0))
    cst = lambda shp: pl.BlockSpec(shp, lambda b: tuple(0 for _ in shp))
    cparams = lambda sem: pltpu.CompilerParams(
        dimension_semantics=sem,
        vmem_limit_bytes=48 * 1024 * 1024)   # explicit; re-derive TV for v7x (64 MiB)

    # ---- kernel 1: states (h, gen gate, copy-weighted alignment) ----
    h, gen, cprobs = pl.pallas_call(
        decoder_state_kernel,
        out_shape=(
            jax.ShapeDtypeStruct((B, T, E), param_dtype),
            jax.ShapeDtypeStruct((B, T, 1), f32),
            jax.ShapeDtypeStruct((B, T, S), f32),
        ),
        grid_spec=pltpu.PrefetchScalarGridSpec(
            num_scalar_prefetch=0,
            grid=(nb,),
            in_specs=[
                blk3((Bb, T, E)), blk3((Bb, S, E)), blk3((Bb, 1, S)), blk3((Bb, 1, 1)),
                cst((E, E)), cst((E, E)), cst((E, E)),
                cst((1, E)), cst((1, E)), cst((1, E)),
                cst((E, E)), cst((1, E)),
                cst((1, E)), cst((1, E)),
                cst((1, E)), cst((1, E)), cst((1, 1)),
                cst((E, F)), cst((1, F)), cst((F, E)), cst((1, E)),
                cst((1, E)), cst((1, E)),
            ],
            out_specs=[blk3((Bb, T, E)), blk3((Bb, T, 1)), blk3((Bb, T, S))],
        ),
        compiler_params=cparams(("parallel",)),
    )(outs_b, mem_b, mask_b, bias_b,
      wq, wk, wv, bq, bk, bv, wo, bo,
      lna_g, lna_b, wdx, wda, bdd,
      w1, b1, w2, b2, lnf_g, lnf_b)

    # ---- kernel 2: logsumexp over vocab tiles ----
    lse = pl.pallas_call(
        vocab_lse_kernel,
        out_shape=jax.ShapeDtypeStruct((B, T, 1), f32),
        grid_spec=pltpu.PrefetchScalarGridSpec(
            num_scalar_prefetch=0,
            grid=(nb, nv),
            in_specs=[
                pl.BlockSpec((Bb, T, E), lambda b, v: (b, 0, 0)),
                pl.BlockSpec((E, TV), lambda b, v: (0, v)),
            ],
            out_specs=pl.BlockSpec((Bb, T, 1), lambda b, v: (b, 0, 0)),
            scratch_shapes=[pltpu.VMEM((Bb * T, 1), f32),
                            pltpu.VMEM((Bb * T, 1), f32)],
        ),
        compiler_params=cparams(("parallel", "arbitrary")),
    )(h, wout)

    # ---- kernel 3: per-vocab-tile output (generation + copy + log) ----
    out = pl.pallas_call(
        vocab_output_kernel,
        out_shape=jax.ShapeDtypeStruct((B, T, V), f32),
        grid_spec=pltpu.PrefetchScalarGridSpec(
            num_scalar_prefetch=0,
            grid=(nb, nv),
            in_specs=[
                pl.BlockSpec((Bb, T, E), lambda b, v: (b, 0, 0)),
                pl.BlockSpec((Bb, T, 1), lambda b, v: (b, 0, 0)),
                pl.BlockSpec((Bb, T, 1), lambda b, v: (b, 0, 0)),
                pl.BlockSpec((Bb, T, S), lambda b, v: (b, 0, 0)),
                pl.BlockSpec((Bb, 1, S), lambda b, v: (b, 0, 0)),
                pl.BlockSpec((E, TV), lambda b, v: (0, v)),
            ],
            out_specs=pl.BlockSpec((Bb, T, TV), lambda b, v: (b, 0, v)),
        ),
        compiler_params=cparams(("parallel", "arbitrary")),
    )(h, lse, gen, cprobs, cseq_b, wout)

    return jnp.transpose(out, (1, 0, 2))        # (T, B, V)


# --------------------------------------------------------------------------
# Pure-JAX reference mirroring the PyTorch forward (eval mode)
# --------------------------------------------------------------------------
def reference(outs, mem, mem_mask, mem_bias, copy_seq, params):
    T, B, E = outs.shape
    V = params["wout"].shape[0]
    scale = E ** (-0.5)
    wq, wk, wv = (params["in_proj_w"][i * E:(i + 1) * E] for i in range(3))
    bq, bk, bv = (params["in_proj_b"][i * E:(i + 1) * E] for i in range(3))

    q = (outs @ wq.T + bq) * scale
    k = mem @ wk.T + bk
    v = mem @ wv.T + bv
    scores = jnp.einsum("tbe,sbe->bts", q, k) + mem_bias[:, None, :]
    mask = jnp.transpose(mem_mask, (1, 0))[:, None, :]
    scores = jnp.where(mask, scores, -jnp.inf)
    align = jax.nn.softmax(scores, axis=-1)                         # (B,T,S)
    ctx = jnp.einsum("bts,sbe->tbe", align, v)
    attn = ctx @ params["out_proj_w"].T + params["out_proj_b"]

    ln = lambda z, g, b: ((z - z.mean(-1, keepdims=True))
                          / jnp.sqrt(z.var(-1, keepdims=True) + 1e-5)) * g + b
    attn_norm = ln(attn, params["ln_a_g"], params["ln_a_b"])
    gates = jax.nn.softmax(jnp.concatenate([outs, attn_norm], -1)
                           @ params["diverter_w"].T + params["diverter_b"], -1)
    gen_gate, copy_gate = gates[..., 0:1], gates[..., 1:2]

    h = ln(outs + attn, params["ln_a_g"], params["ln_a_b"])
    h = jax.nn.relu(h @ params["w1"].T + params["b1"]) @ params["w2"].T + params["b2"]
    h = ln(h, params["ln_f_g"], params["ln_f_b"])
    probs = gen_gate * jax.nn.softmax(h @ params["wout"].T, -1)     # (T,B,V)

    copy_probs = copy_gate * jnp.transpose(align, (1, 0, 2))        # (T,B,S)
    onehot = jax.nn.one_hot(jnp.transpose(copy_seq, (1, 0)), V, dtype=probs.dtype)
    probs = probs + jnp.einsum("tbs,bsv->tbv", copy_probs, onehot)
    return jnp.log(probs + 1e-12)


if __name__ == "__main__":
    T, S, B = 8, 8, 4          # tgt_len, src_len, batch
    E, F, V = 32, 64, 256      # embed_dim, ff_embed_dim, vocab_size
    std = 0.02

    key = jax.random.PRNGKey(0)
    ks = jax.random.split(key, 12)

    params = dict(
        in_proj_w=std * jax.random.normal(ks[0], (3 * E, E), jnp.float32),
        in_proj_b=jnp.zeros((3 * E,), jnp.float32),
        out_proj_w=std * jax.random.normal(ks[1], (E, E), jnp.float32),
        out_proj_b=jnp.zeros((E,), jnp.float32),
        ln_a_g=jnp.ones((E,), jnp.float32),
        ln_a_b=jnp.zeros((E,), jnp.float32),
        diverter_w=std * jax.random.normal(ks[2], (2, 2 * E), jnp.float32),
        diverter_b=jnp.zeros((2,), jnp.float32),
        w1=std * jax.random.normal(ks[3], (F, E), jnp.float32),
        b1=jnp.zeros((F,), jnp.float32),
        w2=std * jax.random.normal(ks[4], (E, F), jnp.float32),
        b2=jnp.zeros((E,), jnp.float32),
        ln_f_g=jnp.ones((E,), jnp.float32),
        ln_f_b=jnp.zeros((E,), jnp.float32),
        wout=std * jax.random.normal(ks[5], (V, E), jnp.float32),
    )

    outs = jax.random.normal(ks[6], (T, B, E), jnp.float32)
    mem = jax.random.normal(ks[7], (S, B, E), jnp.float32)
    mem_bias = jax.random.normal(ks[8], (B, 1), jnp.float32)
    copy_seq = jax.random.randint(ks[9], (S, B), 0, V, jnp.int32)
    mem_mask = (jnp.ones((S, B), dtype=bool)
                .at[S - 2:, 1].set(False)
                .at[S - 3:, 3].set(False))          # True = keep

    ref = reference(outs, mem, mem_mask, mem_bias, copy_seq, params)

    # 1) f32 weights: tight parity with the reference; small blocks exercise
    #    both grid axes (2 batch blocks x 2 vocab tiles).
    lp32 = copy_token_decoder(outs, mem, mem_mask, mem_bias, copy_seq, params,
                              param_dtype=jnp.float32, block_b=2, tile_v=128)
    jax.block_until_ready(lp32)
    assert lp32.shape == (T, B, V)
    err32 = float(jnp.max(jnp.abs(lp32 - ref)))
    assert jnp.allclose(lp32, ref, atol=5e-4, rtol=5e-4), err32

    # 2) default path: bf16 weights on the MXU, f32 accumulation/elementwise.
    #    Looser tolerance reflects bf16 weight rounding only.
    lp16 = copy_token_decoder(outs, mem, mem_mask, mem_bias, copy_seq, params)
    jax.block_until_ready(lp16)
    assert lp16.shape == (T, B, V)
    err16 = float(jnp.max(jnp.abs(lp16 - ref)))
    assert jnp.allclose(lp16, ref, atol=2.5e-2, rtol=2.5e-2), err16

    print("KERNEL_OK")
</pallas_src>

<mosaic_0001>
module attributes {stable_mosaic.version = 11 : i64} {
  func.func @decoder_state_kernel(%arg0: i32, %arg1: memref<2x8x32xf32, #tpu.memory_space<vmem>>, %arg2: memref<2x8x32xf32, #tpu.memory_space<vmem>>, %arg3: memref<2x1x8xf32, #tpu.memory_space<vmem>>, %arg4: memref<2x1x1xf32, #tpu.memory_space<vmem>>, %arg5: memref<32x32xf32, #tpu.memory_space<vmem>>, %arg6: memref<32x32xf32, #tpu.memory_space<vmem>>, %arg7: memref<32x32xf32, #tpu.memory_space<vmem>>, %arg8: memref<1x32xf32, #tpu.memory_space<vmem>>, %arg9: memref<1x32xf32, #tpu.memory_space<vmem>>, %arg10: memref<1x32xf32, #tpu.memory_space<vmem>>, %arg11: memref<32x32xf32, #tpu.memory_space<vmem>>, %arg12: memref<1x32xf32, #tpu.memory_space<vmem>>, %arg13: memref<1x32xf32, #tpu.memory_space<vmem>>, %arg14: memref<1x32xf32, #tpu.memory_space<vmem>>, %arg15: memref<1x32xf32, #tpu.memory_space<vmem>>, %arg16: memref<1x32xf32, #tpu.memory_space<vmem>>, %arg17: memref<1x1xf32, #tpu.memory_space<vmem>>, %arg18: memref<32x64xf32, #tpu.memory_space<vmem>>, %arg19: memref<1x64xf32, #tpu.memory_space<vmem>>, %arg20: memref<64x32xf32, #tpu.memory_space<vmem>>, %arg21: memref<1x32xf32, #tpu.memory_space<vmem>>, %arg22: memref<1x32xf32, #tpu.memory_space<vmem>>, %arg23: memref<1x32xf32, #tpu.memory_space<vmem>>, %arg24: memref<2x8x32xf32, #tpu.memory_space<vmem>>, %arg25: memref<2x8x1xf32, #tpu.memory_space<vmem>>, %arg26: memref<2x8x8xf32, #tpu.memory_space<vmem>>) attributes {dimension_semantics = [#tpu.dimension_semantics<parallel>], iteration_bounds = array<i64: 2>, scalar_prefetch = 0 : i64, scratch_operands = 0 : i64, tpu.core_type = #tpu.core_type<tc>, window_params = [{transform_indices = @transform_0, window_bounds = array<i64: 2, 8, 32>}, {transform_indices = @transform_1, window_bounds = array<i64: 2, 8, 32>}, {transform_indices = @transform_2, window_bounds = array<i64: 2, 1, 8>}, {transform_indices = @transform_3, window_bounds = array<i64: 2, 1, 1>}, {pipeline_mode = #tpu.pipeline_mode<synchronous>, transform_indices = @transform_4, window_bounds = array<i64: 32, 32>}, {pipeline_mode = #tpu.pipeline_mode<synchronous>, transform_indices = @transform_5, window_bounds = array<i64: 32, 32>}, {pipeline_mode = #tpu.pipeline_mode<synchronous>, transform_indices = @transform_6, window_bounds = array<i64: 32, 32>}, {pipeline_mode = #tpu.pipeline_mode<synchronous>, transform_indices = @transform_7, window_bounds = array<i64: 1, 32>}, {pipeline_mode = #tpu.pipeline_mode<synchronous>, transform_indices = @transform_8, window_bounds = array<i64: 1, 32>}, {pipeline_mode = #tpu.pipeline_mode<synchronous>, transform_indices = @transform_9, window_bounds = array<i64: 1, 32>}, {pipeline_mode = #tpu.pipeline_mode<synchronous>, transform_indices = @transform_10, window_bounds = array<i64: 32, 32>}, {pipeline_mode = #tpu.pipeline_mode<synchronous>, transform_indices = @transform_11, window_bounds = array<i64: 1, 32>}, {pipeline_mode = #tpu.pipeline_mode<synchronous>, transform_indices = @transform_12, window_bounds = array<i64: 1, 32>}, {pipeline_mode = #tpu.pipeline_mode<synchronous>, transform_indices = @transform_13, window_bounds = array<i64: 1, 32>}, {pipeline_mode = #tpu.pipeline_mode<synchronous>, transform_indices = @transform_14, window_bounds = array<i64: 1, 32>}, {pipeline_mode = #tpu.pipeline_mode<synchronous>, transform_indices = @transform_15, window_bounds = array<i64: 1, 32>}, {pipeline_mode = #tpu.pipeline_mode<synchronous>, transform_indices = @transform_16, window_bounds = array<i64: 1, 1>}, {pipeline_mode = #tpu.pipeline_mode<synchronous>, transform_indices = @transform_17, window_bounds = array<i64: 32, 64>}, {pipeline_mode = #tpu.pipeline_mode<synchronous>, transform_indices = @transform_18, window_bounds = array<i64: 1, 64>}, {pipeline_mode = #tpu.pipeline_mode<synchronous>, transform_indices = @transform_19, window_bounds = array<i64: 64, 32>}, {pipeline_mode = #tpu.pipeline_mode<synchronous>, transform_indices = @transform_20, window_bounds = array<i64: 1, 32>}, {pipeline_mode = #tpu.pipeline_mode<synchronous>, transform_indices = @transform_21, window_bounds = array<i64: 1, 32>}, {pipeline_mode = #tpu.pipeline_mode<synchronous>, transform_indices = @transform_22, window_bounds = array<i64: 1, 32>}, {transform_indices = @transform_23, window_bounds = array<i64: 2, 8, 32>}, {transform_indices = @transform_24, window_bounds = array<i64: 2, 8, 1>}, {transform_indices = @transform_25, window_bounds = array<i64: 2, 8, 8>}]} {
    %c0 = arith.constant 0 : index
    %c0_0 = arith.constant 0 : index
    %c0_1 = arith.constant 0 : index
    %0 = vector.load %arg1[%c0, %c0_0, %c0_1] : memref<2x8x32xf32, #tpu.memory_space<vmem>>, vector<2x8x32xf32>
    %c0_2 = arith.constant 0 : index
    %c0_3 = arith.constant 0 : index
    %c0_4 = arith.constant 0 : index
    %1 = vector.load %arg2[%c0_2, %c0_3, %c0_4] : memref<2x8x32xf32, #tpu.memory_space<vmem>>, vector<2x8x32xf32>
    %2 = vector.shape_cast %0 : vector<2x8x32xf32> to vector<16x32xf32>
    %3 = vector.shape_cast %1 : vector<2x8x32xf32> to vector<16x32xf32>
    %c0_5 = arith.constant 0 : index
    %c0_6 = arith.constant 0 : index
    %4 = vector.load %arg5[%c0_5, %c0_6] : memref<32x32xf32, #tpu.memory_space<vmem>>, vector<32x32xf32>
    %cst = arith.constant dense<0.000000e+00> : vector<16x32xf32>
    %5 = tpu.matmul %2, %4, %cst {dimension_numbers = #tpu.dot_dimension_numbers<[1], [0], [0], [1], [0, 0, 1, 1], [], []>} : vector<16x32xf32>, vector<32x32xf32>, vector<16x32xf32> -> vector<16x32xf32>
    %c0_7 = arith.constant 0 : index
    %c0_8 = arith.constant 0 : index
    %6 = vector.load %arg8[%c0_7, %c0_8] : memref<1x32xf32, #tpu.memory_space<vmem>>, vector<1x32xf32>
    %7 = vector.broadcast %6 : vector<1x32xf32> to vector<16x32xf32>
    %8 = arith.addf %5, %7 : vector<16x32xf32>
    %c0_9 = arith.constant 0 : index
    %c0_10 = arith.constant 0 : index
    %9 = vector.load %arg6[%c0_9, %c0_10] : memref<32x32xf32, #tpu.memory_space<vmem>>, vector<32x32xf32>
    %cst_11 = arith.constant dense<0.000000e+00> : vector<16x32xf32>
    %10 = tpu.matmul %3, %9, %cst_11 {dimension_numbers = #tpu.dot_dimension_numbers<[1], [0], [0], [1], [0, 0, 1, 1], [], []>} : vector<16x32xf32>, vector<32x32xf32>, vector<16x32xf32> -> vector<16x32xf32>
    %c0_12 = arith.constant 0 : index
    %c0_13 = arith.constant 0 : index
    %11 = vector.load %arg9[%c0_12, %c0_13] : memref<1x32xf32, #tpu.memory_space<vmem>>, vector<1x32xf32>
    %12 = vector.broadcast %11 : vector<1x32xf32> to vector<16x32xf32>
    %13 = arith.addf %10, %12 : vector<16x32xf32>
    %c0_14 = arith.constant 0 : index
    %c0_15 = arith.constant 0 : index
    %14 = vector.load %arg7[%c0_14, %c0_15] : memref<32x32xf32, #tpu.memory_space<vmem>>, vector<32x32xf32>
    %cst_16 = arith.constant dense<0.000000e+00> : vector<16x32xf32>
    %15 = tpu.matmul %3, %14, %cst_16 {dimension_numbers = #tpu.dot_dimension_numbers<[1], [0], [0], [1], [0, 0, 1, 1], [], []>} : vector<16x32xf32>, vector<32x32xf32>, vector<16x32xf32> -> vector<16x32xf32>
    %c0_17 = arith.constant 0 : index
    %c0_18 = arith.constant 0 : index
    %16 = vector.load %arg10[%c0_17, %c0_18] : memref<1x32xf32, #tpu.memory_space<vmem>>, vector<1x32xf32>
    %17 = vector.broadcast %16 : vector<1x32xf32> to vector<16x32xf32>
    %18 = arith.addf %15, %17 : vector<16x32xf32>
    %19 = vector.shape_cast %8 : vector<16x32xf32> to vector<2x8x32xf32>
    %20 = vector.shape_cast %13 : vector<16x32xf32> to vector<2x8x32xf32>
    %21 = vector.shape_cast %18 : vector<16x32xf32> to vector<2x8x32xf32>
    "tpu.trace_start"() <{level = 10 : i32, message = "bte,bse->bts"}> : () -> ()
    %cst_19 = arith.constant dense<0.000000e+00> : vector<2x8x8xf32>
    %22 = tpu.matmul %19, %20, %cst_19 {dimension_numbers = #tpu.dot_dimension_numbers<[2], [2], [1], [1], [0, 0, 0, 1, 1, 1], [0], [0]>} : vector<2x8x32xf32>, vector<2x8x32xf32>, vector<2x8x8xf32> -> vector<2x8x8xf32>
    "tpu.trace_stop"() : () -> ()
    %c0_20 = arith.constant 0 : index
    %c0_21 = arith.constant 0 : index
    %c0_22 = arith.constant 0 : index
    %23 = vector.load %arg4[%c0_20, %c0_21, %c0_22] : memref<2x1x1xf32, #tpu.memory_space<vmem>>, vector<2x1x1xf32>
    %24 = vector.broadcast %23 : vector<2x1x1xf32> to vector<2x8x8xf32>
    %25 = arith.addf %22, %24 : vector<2x8x8xf32>
    %c0_23 = arith.constant 0 : index
    %c0_24 = arith.constant 0 : index
    %c0_25 = arith.constant 0 : index
    %26 = vector.load %arg3[%c0_23, %c0_24, %c0_25] : memref<2x1x8xf32, #tpu.memory_space<vmem>>, vector<2x1x8xf32>
    %cst_26 = arith.constant 5.000000e-01 : f32
    %27 = vector.broadcast %cst_26 : f32 to vector<2x1x8xf32>
    %28 = arith.cmpf ogt, %26, %27 : vector<2x1x8xf32>
    %cst_27 = arith.constant -1.000000e+30 : f32
    %29 = vector.shape_cast %28 : vector<2x1x8xi1> to vector<2x1x8xi1>
    %30 = vector.broadcast %29 : vector<2x1x8xi1> to vector<2x8x8xi1>
    %31 = vector.broadcast %cst_27 : f32 to vector<2x8x8xf32>
    %32 = arith.select %30, %25, %31 : vector<2x8x8xi1>, vector<2x8x8xf32>
    %cst_28 = arith.constant dense<0xFF800000> : vector<2x8xf32>
    %33 = vector.multi_reduction <maximumf>, %32, %cst_28 [2] : vector<2x8x8xf32> to vector<2x8xf32>
    %34 = vector.shape_cast %33 : vector<2x8xf32> to vector<2x8x1xf32>
    %35 = vector.broadcast %34 : vector<2x8x1xf32> to vector<2x8x8xf32>
    %36 = arith.subf %32, %35 : vector<2x8x8xf32>
    %37 = math.exp %36 : vector<2x8x8xf32>
    %cst_29 = arith.constant dense<0.000000e+00> : vector<2x8xf32>
    %38 = vector.multi_reduction <add>, %37, %cst_29 [2] : vector<2x8x8xf32> to vector<2x8xf32>
    %39 = vector.shape_cast %38 : vector<2x8xf32> to vector<2x8x1xf32>
    %40 = vector.broadcast %39 : vector<2x8x1xf32> to vector<2x8x8xf32>
    %41 = arith.divf %37, %40 : vector<2x8x8xf32>
    "tpu.trace_start"() <{level = 10 : i32, message = "bts,bse->bte"}> : () -> ()
    %cst_30 = arith.constant dense<0.000000e+00> : vector<2x8x32xf32>
    %42 = tpu.matmul %41, %21, %cst_30 {dimension_numbers = #tpu.dot_dimension_numbers<[2], [1], [1], [2], [0, 0, 0, 1, 1, 2], [0], [0]>} : vector<2x8x8xf32>, vector<2x8x32xf32>, vector<2x8x32xf32> -> vector<2x8x32xf32>
    "tpu.trace_stop"() : () -> ()
    %43 = vector.shape_cast %42 : vector<2x8x32xf32> to vector<16x32xf32>
    %c0_31 = arith.constant 0 : index
    %c0_32 = arith.constant 0 : index
    %44 = vector.load %arg11[%c0_31, %c0_32] : memref<32x32xf32, #tpu.memory_space<vmem>>, vector<32x32xf32>
    %cst_33 = arith.constant dense<0.000000e+00> : vector<16x32xf32>
    %45 = tpu.matmul %43, %44, %cst_33 {dimension_numbers = #tpu.dot_dimension_numbers<[1], [0], [0], [1], [0, 0, 1, 1], [], []>} : vector<16x32xf32>, vector<32x32xf32>, vector<16x32xf32> -> vector<16x32xf32>
    %c0_34 = arith.constant 0 : index
    %c0_35 = arith.constant 0 : index
    %46 = vector.load %arg12[%c0_34, %c0_35] : memref<1x32xf32, #tpu.memory_space<vmem>>, vector<1x32xf32>
    %47 = vector.broadcast %46 : vector<1x32xf32> to vector<16x32xf32>
    %48 = arith.addf %45, %47 : vector<16x32xf32>
    %c0_36 = arith.constant 0 : index
    %c0_37 = arith.constant 0 : index
    %49 = vector.load %arg13[%c0_36, %c0_37] : memref<1x32xf32, #tpu.memory_space<vmem>>, vector<1x32xf32>
    %c0_38 = arith.constant 0 : index
    %c0_39 = arith.constant 0 : index
    %50 = vector.load %arg14[%c0_38, %c0_39] : memref<1x32xf32, #tpu.memory_space<vmem>>, vector<1x32xf32>
    %cst_40 = arith.constant dense<0.000000e+00> : vector<16xf32>
    %51 = vector.multi_reduction <add>, %48, %cst_40 [1] : vector<16x32xf32> to vector<16xf32>
    %52 = vector.shape_cast %51 : vector<16xf32> to vector<16x1xf32>
    %cst_41 = arith.constant 3.200000e+01 : f32
    %53 = vector.broadcast %cst_41 : f32 to vector<16x1xf32>
    %54 = arith.divf %52, %53 : vector<16x1xf32>
    %55 = vector.broadcast %54 : vector<16x1xf32> to vector<16x32xf32>
    %56 = arith.subf %48, %55 : vector<16x32xf32>
    %57 = arith.mulf %56, %56 : vector<16x32xf32>
    %cst_42 = arith.constant dense<0.000000e+00> : vector<16xf32>
    %58 = vector.multi_reduction <add>, %57, %cst_42 [1] : vector<16x32xf32> to vector<16xf32>
    %59 = vector.shape_cast %58 : vector<16xf32> to vector<16x1xf32>
    %cst_43 = arith.constant 3.200000e+01 : f32
    %60 = vector.broadcast %cst_43 : f32 to vector<16x1xf32>
    %61 = arith.divf %59, %60 : vector<16x1xf32>
    %62 = vector.broadcast %54 : vector<16x1xf32> to vector<16x32xf32>
    %63 = arith.subf %48, %62 : vector<16x32xf32>
    %cst_44 = arith.constant 9.99999974E-6 : f32
    %64 = vector.broadcast %cst_44 : f32 to vector<16x1xf32>
    %65 = arith.addf %61, %64 : vector<16x1xf32>
    %66 = math.rsqrt %65 : vector<16x1xf32>
    %67 = vector.broadcast %66 : vector<16x1xf32> to vector<16x32xf32>
    %68 = arith.mulf %63, %67 : vector<16x32xf32>
    %69 = vector.broadcast %49 : vector<1x32xf32> to vector<16x32xf32>
    %70 = arith.mulf %68, %69 : vector<16x32xf32>
    %71 = vector.broadcast %50 : vector<1x32xf32> to vector<16x32xf32>
    %72 = arith.addf %70, %71 : vector<16x32xf32>
    %c0_45 = arith.constant 0 : index
    %c0_46 = arith.constant 0 : index
    %73 = vector.load %arg15[%c0_45, %c0_46] : memref<1x32xf32, #tpu.memory_space<vmem>>, vector<1x32xf32>
    %74 = vector.broadcast %73 : vector<1x32xf32> to vector<16x32xf32>
    %75 = arith.mulf %2, %74 : vector<16x32xf32>
    %cst_47 = arith.constant dense<0.000000e+00> : vector<16xf32>
    %76 = vector.multi_reduction <add>, %75, %cst_47 [1] : vector<16x32xf32> to vector<16xf32>
    %77 = vector.shape_cast %76 : vector<16xf32> to vector<16x1xf32>
    %c0_48 = arith.constant 0 : index
    %c0_49 = arith.constant 0 : index
    %78 = vector.load %arg16[%c0_48, %c0_49] : memref<1x32xf32, #tpu.memory_space<vmem>>, vector<1x32xf32>
    %79 = vector.broadcast %78 : vector<1x32xf32> to vector<16x32xf32>
    %80 = arith.mulf %72, %79 : vector<16x32xf32>
    %cst_50 = arith.constant dense<0.000000e+00> : vector<16xf32>
    %81 = vector.multi_reduction <add>, %80, %cst_50 [1] : vector<16x32xf32> to vector<16xf32>
    %82 = vector.shape_cast %81 : vector<16xf32> to vector<16x1xf32>
    %83 = arith.addf %77, %82 : vector<16x1xf32>
    %c0_51 = arith.constant 0 : index
    %c0_52 = arith.constant 0 : index
    %84 = vector.load %arg17[%c0_51, %c0_52] : memref<1x1xf32, #tpu.memory_space<vmem>>, vector<1x1xf32>
    %85 = vector.broadcast %84 : vector<1x1xf32> to vector<16x1xf32>
    %86 = arith.addf %83, %85 : vector<16x1xf32>
    %cst_53 = arith.constant 0.000000e+00 : f32
    %87 = vector.broadcast %cst_53 : f32 to vector<16x1xf32>
    %88 = arith.subf %87, %86 : vector<16x1xf32>
    %89 = math.exp %88 : vector<16x1xf32>
    %cst_54 = arith.constant 1.000000e+00 : f32
    %90 = vector.broadcast %cst_54 : f32 to vector<16x1xf32>
    %91 = arith.addf %90, %89 : vector<16x1xf32>
    %cst_55 = arith.constant 1.000000e+00 : f32
    %92 = vector.broadcast %cst_55 : f32 to vector<16x1xf32>
    %93 = arith.divf %92, %91 : vector<16x1xf32>
    %cst_56 = arith.constant 1.000000e+00 : f32
    %94 = vector.broadcast %cst_56 : f32 to vector<16x1xf32>
    %95 = arith.subf %94, %93 : vector<16x1xf32>
    %96 = arith.addf %2, %48 : vector<16x32xf32>
    %c0_57 = arith.constant 0 : index
    %c0_58 = arith.constant 0 : index
    %97 = vector.load %arg13[%c0_57, %c0_58] : memref<1x32xf32, #tpu.memory_space<vmem>>, vector<1x32xf32>
    %c0_59 = arith.constant 0 : index
    %c0_60 = arith.constant 0 : index
    %98 = vector.load %arg14[%c0_59, %c0_60] : memref<1x32xf32, #tpu.memory_space<vmem>>, vector<1x32xf32>
    %cst_61 = arith.constant dense<0.000000e+00> : vector<16xf32>
    %99 = vector.multi_reduction <add>, %96, %cst_61 [1] : vector<16x32xf32> to vector<16xf32>
    %100 = vector.shape_cast %99 : vector<16xf32> to vector<16x1xf32>
    %cst_62 = arith.constant 3.200000e+01 : f32
    %101 = vector.broadcast %cst_62 : f32 to vector<16x1xf32>
    %102 = arith.divf %100, %101 : vector<16x1xf32>
    %103 = vector.broadcast %102 : vector<16x1xf32> to vector<16x32xf32>
    %104 = arith.subf %96, %103 : vector<16x32xf32>
    %105 = arith.mulf %104, %104 : vector<16x32xf32>
    %cst_63 = arith.constant dense<0.000000e+00> : vector<16xf32>
    %106 = vector.multi_reduction <add>, %105, %cst_63 [1] : vector<16x32xf32> to vector<16xf32>
    %107 = vector.shape_cast %106 : vector<16xf32> to vector<16x1xf32>
    %cst_64 = arith.constant 3.200000e+01 : f32
    %108 = vector.broadcast %cst_64 : f32 to vector<16x1xf32>
    %109 = arith.divf %107, %108 : vector<16x1xf32>
    %110 = vector.broadcast %102 : vector<16x1xf32> to vector<16x32xf32>
    %111 = arith.subf %96, %110 : vector<16x32xf32>
    %cst_65 = arith.constant 9.99999974E-6 : f32
    %112 = vector.broadcast %cst_65 : f32 to vector<16x1xf32>
    %113 = arith.addf %109, %112 : vector<16x1xf32>
    %114 = math.rsqrt %113 : vector<16x1xf32>
    %115 = vector.broadcast %114 : vector<16x1xf32> to vector<16x32xf32>
    %116 = arith.mulf %111, %115 : vector<16x32xf32>
    %117 = vector.broadcast %97 : vector<1x32xf32> to vector<16x32xf32>
    %118 = arith.mulf %116, %117 : vector<16x32xf32>
    %119 = vector.broadcast %98 : vector<1x32xf32> to vector<16x32xf32>
    %120 = arith.addf %118, %119 : vector<16x32xf32>
    %c0_66 = arith.constant 0 : index
    %c0_67 = arith.constant 0 : index
    %121 = vector.load %arg18[%c0_66, %c0_67] : memref<32x64xf32, #tpu.memory_space<vmem>>, vector<32x64xf32>
    %cst_68 = arith.constant dense<0.000000e+00> : vector<16x64xf32>
    %122 = tpu.matmul %120, %121, %cst_68 {dimension_numbers = #tpu.dot_dimension_numbers<[1], [0], [0], [1], [0, 0, 1, 1], [], []>} : vector<16x32xf32>, vector<32x64xf32>, vector<16x64xf32> -> vector<16x64xf32>
    %c0_69 = arith.constant 0 : index
    %c0_70 = arith.constant 0 : index
    %123 = vector.load %arg19[%c0_69, %c0_70] : memref<1x64xf32, #tpu.memory_space<vmem>>, vector<1x64xf32>
    %124 = vector.broadcast %123 : vector<1x64xf32> to vector<16x64xf32>
    %125 = arith.addf %122, %124 : vector<16x64xf32>
    %cst_71 = arith.constant 0.000000e+00 : f32
    %126 = vector.broadcast %cst_71 : f32 to vector<16x64xf32>
    %127 = arith.maximumf %125, %126 : vector<16x64xf32>
    %c0_72 = arith.constant 0 : index
    %c0_73 = arith.constant 0 : index
    %128 = vector.load %arg20[%c0_72, %c0_73] : memref<64x32xf32, #tpu.memory_space<vmem>>, vector<64x32xf32>
    %cst_74 = arith.constant dense<0.000000e+00> : vector<16x32xf32>
    %129 = tpu.matmul %127, %128, %cst_74 {dimension_numbers = #tpu.dot_dimension_numbers<[1], [0], [0], [1], [0, 0, 1, 1], [], []>} : vector<16x64xf32>, vector<64x32xf32>, vector<16x32xf32> -> vector<16x32xf32>
    %c0_75 = arith.constant 0 : index
    %c0_76 = arith.constant 0 : index
    %130 = vector.load %arg21[%c0_75, %c0_76] : memref<1x32xf32, #tpu.memory_space<vmem>>, vector<1x32xf32>
    %131 = vector.broadcast %130 : vector<1x32xf32> to vector<16x32xf32>
    %132 = arith.addf %129, %131 : vector<16x32xf32>
    %c0_77 = arith.constant 0 : index
    %c0_78 = arith.constant 0 : index
    %133 = vector.load %arg22[%c0_77, %c0_78] : memref<1x32xf32, #tpu.memory_space<vmem>>, vector<1x32xf32>
    %c0_79 = arith.constant 0 : index
    %c0_80 = arith.constant 0 : index
    %134 = vector.load %arg23[%c0_79, %c0_80] : memref<1x32xf32, #tpu.memory_space<vmem>>, vector<1x32xf32>
    %cst_81 = arith.constant dense<0.000000e+00> : vector<16xf32>
    %135 = vector.multi_reduction <add>, %132, %cst_81 [1] : vector<16x32xf32> to vector<16xf32>
    %136 = vector.shape_cast %135 : vector<16xf32> to vector<16x1xf32>
    %cst_82 = arith.constant 3.200000e+01 : f32
    %137 = vector.broadcast %cst_82 : f32 to vector<16x1xf32>
    %138 = arith.divf %136, %137 : vector<16x1xf32>
    %139 = vector.broadcast %138 : vector<16x1xf32> to vector<16x32xf32>
    %140 = arith.subf %132, %139 : vector<16x32xf32>
    %141 = arith.mulf %140, %140 : vector<16x32xf32>
    %cst_83 = arith.constant dense<0.000000e+00> : vector<16xf32>
    %142 = vector.multi_reduction <add>, %141, %cst_83 [1] : vector<16x32xf32> to vector<16xf32>
    %143 = vector.shape_cast %142 : vector<16xf32> to vector<16x1xf32>
    %cst_84 = arith.constant 3.200000e+01 : f32
    %144 = vector.broadcast %cst_84 : f32 to vector<16x1xf32>
    %145 = arith.divf %143, %144 : vector<16x1xf32>
    %146 = vector.broadcast %138 : vector<16x1xf32> to vector<16x32xf32>
    %147 = arith.subf %132, %146 : vector<16x32xf32>
    %cst_85 = arith.constant 9.99999974E-6 : f32
    %148 = vector.broadcast %cst_85 : f32 to vector<16x1xf32>
    %149 = arith.addf %145, %148 : vector<16x1xf32>
    %150 = math.rsqrt %149 : vector<16x1xf32>
    %151 = vector.broadcast %150 : vector<16x1xf32> to vector<16x32xf32>
    %152 = arith.mulf %147, %151 : vector<16x32xf32>
    %153 = vector.broadcast %133 : vector<1x32xf32> to vector<16x32xf32>
    %154 = arith.mulf %152, %153 : vector<16x32xf32>
    %155 = vector.broadcast %134 : vector<1x32xf32> to vector<16x32xf32>
    %156 = arith.addf %154, %155 : vector<16x32xf32>
    %157 = vector.shape_cast %156 : vector<16x32xf32> to vector<2x8x32xf32>
    %c0_86 = arith.constant 0 : index
    %c0_87 = arith.constant 0 : index
    %c0_88 = arith.constant 0 : index
    %158 = vector.load %arg24[%c0_86, %c0_87, %c0_88] : memref<2x8x32xf32, #tpu.memory_space<vmem>>, vector<2x8x32xf32>
    tpu.vector_store %arg24[%c0_86, %c0_87, %c0_88], %157 {strides = array<i32>} : memref<2x8x32xf32, #tpu.memory_space<vmem>>, vector<2x8x32xf32>,
    %159 = vector.shape_cast %93 : vector<16x1xf32> to vector<2x8x1xf32>
    %c0_89 = arith.constant 0 : index
    %c0_90 = arith.constant 0 : index
    %c0_91 = arith.constant 0 : index
    %160 = vector.load %arg25[%c0_89, %c0_90, %c0_91] : memref<2x8x1xf32, #tpu.memory_space<vmem>>, vector<2x8x1xf32>
    tpu.vector_store %arg25[%c0_89, %c0_90, %c0_91], %159 {strides = array<i32>} : memref<2x8x1xf32, #tpu.memory_space<vmem>>, vector<2x8x1xf32>,
    %161 = vector.shape_cast %95 : vector<16x1xf32> to vector<2x8x1xf32>
    %162 = vector.broadcast %161 : vector<2x8x1xf32> to vector<2x8x8xf32>
    %163 = arith.mulf %162, %41 : vector<2x8x8xf32>
    %c0_92 = arith.constant 0 : index
    %c0_93 = arith.constant 0 : index
    %c0_94 = arith.constant 0 : index
    %164 = vector.load %arg26[%c0_92, %c0_93, %c0_94] : memref<2x8x8xf32, #tpu.memory_space<vmem>>, vector<2x8x8xf32>
    tpu.vector_store %arg26[%c0_92, %c0_93, %c0_94], %163 {strides = array<i32>} : memref<2x8x8xf32, #tpu.memory_space<vmem>>, vector<2x8x8xf32>,
    return
  }
  func.func @transform_0(%arg0: i32) -> (i32, i32, i32) {
    %c0_i32 = arith.constant 0 : i32
    %c0_i32_0 = arith.constant 0 : i32
    %c0_i32_1 = arith.constant 0 : i32
    return %arg0, %c0_i32, %c0_i32_0 : i32, i32, i32
  }
  func.func @transform_1(%arg0: i32) -> (i32, i32, i32) {
    %c0_i32 = arith.constant 0 : i32
    %c0_i32_0 = arith.constant 0 : i32
    %c0_i32_1 = arith.constant 0 : i32
    return %arg0, %c0_i32, %c0_i32_0 : i32, i32, i32
  }
  func.func @transform_2(%arg0: i32) -> (i32, i32, i32) {
    %c0_i32 = arith.constant 0 : i32
    %c0_i32_0 = arith.constant 0 : i32
    %c0_i32_1 = arith.constant 0 : i32
    return %arg0, %c0_i32, %c0_i32_0 : i32, i32, i32
  }
  func.func @transform_3(%arg0: i32) -> (i32, i32, i32) {
    %c0_i32 = arith.constant 0 : i32
    %c0_i32_0 = arith.constant 0 : i32
    %c0_i32_1 = arith.constant 0 : i32
    return %arg0, %c0_i32, %c0_i32_0 : i32, i32, i32
  }
  func.func @transform_4(%arg0: i32) -> (i32, i32) {
    %c0_i32 = arith.constant 0 : i32
    %c0_i32_0 = arith.constant 0 : i32
    %c0_i32_1 = arith.constant 0 : i32
    return %c0_i32, %c0_i32_0 : i32, i32
  }
  func.func @transform_5(%arg0: i32) -> (i32, i32) {
    %c0_i32 = arith.constant 0 : i32
    %c0_i32_0 = arith.constant 0 : i32
    %c0_i32_1 = arith.constant 0 : i32
    return %c0_i32, %c0_i32_0 : i32, i32
  }
  func.func @transform_6(%arg0: i32) -> (i32, i32) {
    %c0_i32 = arith.constant 0 : i32
    %c0_i32_0 = arith.constant 0 : i32
    %c0_i32_1 = arith.constant 0 : i32
    return %c0_i32, %c0_i32_0 : i32, i32
  }
  func.func @transform_7(%arg0: i32) -> (i32, i32) {
    %c0_i32 = arith.constant 0 : i32
    %c0_i32_0 = arith.constant 0 : i32
    %c0_i32_1 = arith.constant 0 : i32
    return %c0_i32, %c0_i32_0 : i32, i32
  }
  func.func @transform_8(%arg0: i32) -> (i32, i32) {
    %c0_i32 = arith.constant 0 : i32
    %c0_i32_0 = arith.constant 0 : i32
    %c0_i32_1 = arith.constant 0 : i32
    return %c0_i32, %c0_i32_0 : i32, i32
  }
  func.func @transform_9(%arg0: i32) -> (i32, i32) {
    %c0_i32 = arith.constant 0 : i32
    %c0_i32_0 = arith.constant 0 : i32
    %c0_i32_1 = arith.constant 0 : i32
    return %c0_i32, %c0_i32_0 : i32, i32
  }
  func.func @transform_10(%arg0: i32) -> (i32, i32) {
    %c0_i32 = arith.constant 0 : i32
    %c0_i32_0 = arith.constant 0 : i32
    %c0_i32_1 = arith.constant 0 : i32
    return %c0_i32, %c0_i32_0 : i32, i32
  }
  func.func @transform_11(%arg0: i32) -> (i32, i32) {
    %c0_i32 = arith.constant 0 : i32
    %c0_i32_0 = arith.constant 0 : i32
    %c0_i32_1 = arith.constant 0 : i32
    return %c0_i32, %c0_i32_0 : i32, i32
  }
  func.func @transform_12(%arg0: i32) -> (i32, i32) {
    %c0_i32 = arith.constant 0 : i32
    %c0_i32_0 = arith.constant 0 : i32
    %c0_i32_1 = arith.constant 0 : i32
    return %c0_i32, %c0_i32_0 : i32, i32
  }
  func.func @transform_13(%arg0: i32) -> (i32, i32) {
    %c0_i32 = arith.constant 0 : i32
    %c0_i32_0 = arith.constant 0 : i32
    %c0_i32_1 = arith.constant 0 : i32
    return %c0_i32, %c0_i32_0 : i32, i32
  }
  func.func @transform_14(%arg0: i32) -> (i32, i32) {
    %c0_i32 = arith.constant 0 : i32
    %c0_i32_0 = arith.constant 0 : i32
    %c0_i32_1 = arith.constant 0 : i32
    return %c0_i32, %c0_i32_0 : i32, i32
  }
  func.func @transform_15(%arg0: i32) -> (i32, i32) {
    %c0_i32 = arith.constant 0 : i32
    %c0_i32_0 = arith.constant 0 : i32
    %c0_i32_1 = arith.constant 0 : i32
    return %c0_i32, %c0_i32_0 : i32, i32
  }
  func.func @transform_16(%arg0: i32) -> (i32, i32) {
    %c0_i32 = arith.constant 0 : i32
    %c0_i32_0 = arith.constant 0 : i32
    %c0_i32_1 = arith.constant 0 : i32
    return %c0_i32, %c0_i32_0 : i32, i32
  }
  func.func @transform_17(%arg0: i32) -> (i32, i32) {
    %c0_i32 = arith.constant 0 : i32
    %c0_i32_0 = arith.constant 0 : i32
    %c0_i32_1 = arith.constant 0 : i32
    return %c0_i32, %c0_i32_0 : i32, i32
  }
  func.func @transform_18(%arg0: i32) -> (i32, i32) {
    %c0_i32 = arith.constant 0 : i32
    %c0_i32_0 = arith.constant 0 : i32
    %c0_i32_1 = arith.constant 0 : i32
    return %c0_i32, %c0_i32_0 : i32, i32
  }
  func.func @transform_19(%arg0: i32) -> (i32, i32) {
    %c0_i32 = arith.constant 0 : i32
    %c0_i32_0 = arith.constant 0 : i32
    %c0_i32_1 = arith.constant 0 : i32
    return %c0_i32, %c0_i32_0 : i32, i32
  }
  func.func @transform_20(%arg0: i32) -> (i32, i32) {
    %c0_i32 = arith.constant 0 : i32
    %c0_i32_0 = arith.constant 0 : i32
    %c0_i32_1 = arith.constant 0 : i32
    return %c0_i32, %c0_i32_0 : i32, i32
  }
  func.func @transform_21(%arg0: i32) -> (i32, i32) {
    %c0_i32 = arith.constant 0 : i32
    %c0_i32_0 = arith.constant 0 : i32
    %c0_i32_1 = arith.constant 0 : i32
    return %c0_i32, %c0_i32_0 : i32, i32
  }
  func.func @transform_22(%arg0: i32) -> (i32, i32) {
    %c0_i32 = arith.constant 0 : i32
    %c0_i32_0 = arith.constant 0 : i32
    %c0_i32_1 = arith.constant 0 : i32
    return %c0_i32, %c0_i32_0 : i32, i32
  }
  func.func @transform_23(%arg0: i32) -> (i32, i32, i32) {
    %c0_i32 = arith.constant 0 : i32
    %c0_i32_0 = arith.constant 0 : i32
    %c0_i32_1 = arith.constant 0 : i32
    return %arg0, %c0_i32, %c0_i32_0 : i32, i32, i32
  }
  func.func @transform_24(%arg0: i32) -> (i32, i32, i32) {
    %c0_i32 = arith.constant 0 : i32
    %c0_i32_0 = arith.constant 0 : i32
    %c0_i32_1 = arith.constant 0 : i32
    return %arg0, %c0_i32, %c0_i32_0 : i32, i32, i32
  }
  func.func @transform_25(%arg0: i32) -> (i32, i32, i32) {
    %c0_i32 = arith.constant 0 : i32
    %c0_i32_0 = arith.constant 0 : i32
    %c0_i32_1 = arith.constant 0 : i32
    return %arg0, %c0_i32, %c0_i32_0 : i32, i32, i32
  }
}

</mosaic_0001>

<llo_original>
// kernel: tpu_custom_call.1
$region0: #{tpu_custom_call.1}
  #allocation0 [shape = 'u32[]', space=smem, size = 0x4, offset = 0x4, fixed_abs, tag = 'smem constant byte address 0x4 - core index']
  #allocation1 [shape = 'u32[72,128]{1,0:T(1,128)}', space=vmem, size = 0x9000, scoped, tag = 'internal scratch']
  #allocation2 [shape = 'f32[1,1]{1,0:T(1,128)S(1)}', space=vmem, size = 0x200, scoped, tag = 'scoped memory for tpu_custom_call.1']
  %s0 = inlined_call_operand.vmem [shape: f32[4,8,32], index: 0, kind: input, shape index: {}]
  %s1 = inlined_call_operand.vmem [shape: f32[4,8,32], index: 1, kind: input, shape index: {}]
  %s2 = inlined_call_operand.vmem [shape: f32[4,1,8], index: 2, kind: input, shape index: {}]
  %s3 = inlined_call_operand.vmem [shape: f32[4,1,1], index: 3, kind: input, shape index: {}]
  %s4 = inlined_call_operand.vmem [shape: f32[32,32], index: 4, kind: input, shape index: {}]
  %s5 = inlined_call_operand.hbm [shape: f32[32,32], index: 5, kind: input, shape index: {}]
  %s6 = inlined_call_operand.hbm [shape: f32[32,32], index: 6, kind: input, shape index: {}]
  %s7 = inlined_call_operand.vmem [shape: f32[1,32], index: 7, kind: input, shape index: {}]
  %s8 = inlined_call_operand.vmem [shape: f32[1,32], index: 8, kind: input, shape index: {}]
  %s9 = inlined_call_operand.vmem [shape: f32[1,32], index: 9, kind: input, shape index: {}]
  %s10 = inlined_call_operand.hbm [shape: f32[32,32], index: 10, kind: input, shape index: {}]
  %s11 = inlined_call_operand.vmem [shape: f32[1,32], index: 11, kind: input, shape index: {}]
  %s12 = inlined_call_operand.vmem [shape: f32[1,32], index: 12, kind: input, shape index: {}]
  %s13 = inlined_call_operand.vmem [shape: f32[1,32], index: 13, kind: input, shape index: {}]
  %s14 = inlined_call_operand.vmem [shape: f32[1,32], index: 14, kind: input, shape index: {}]
  %s15 = inlined_call_operand.vmem [shape: f32[1,32], index: 15, kind: input, shape index: {}]
  %s16 = inlined_call_operand.<no memory space> [shape: f32[1,1], index: 16, kind: input, shape index: {}]
  %s17 = inlined_call_operand.hbm [shape: f32[32,64], index: 17, kind: input, shape index: {}]
  %s18 = inlined_call_operand.vmem [shape: f32[1,64], index: 18, kind: input, shape index: {}]
  %s19 = inlined_call_operand.vmem [shape: f32[64,32], index: 19, kind: input, shape index: {}]
  %s20 = inlined_call_operand.vmem [shape: f32[1,32], index: 20, kind: input, shape index: {}]
  %s21 = inlined_call_operand.vmem [shape: f32[1,32], index: 21, kind: input, shape index: {}]
  %s22 = inlined_call_operand.vmem [shape: f32[1,32], index: 22, kind: input, shape index: {}]
  %s23 = inlined_call_operand.hbm [shape: f32[4,8,32], index: 23, kind: output, shape index: {0}]
  %s24 = inlined_call_operand.vmem [shape: f32[4,8,1], index: 24, kind: output, shape index: {1}]
  %s25 = inlined_call_operand.hbm [shape: f32[4,8,8], index: 25, kind: output, shape index: {2}]
  %26 = xla_tuple %s23, %s24, %s25
  %s27 = sld [smem:[#allocation0]]
  $region157: #{tpu_custom_call.1} parent=0
    _
  %s29 = ssub.s32 1, %s27
  %s30 = scalar_select 0, %s29, %s27
  %v31 = vstv %s16
  %32 = vst [vmem:[#allocation2] sm:$0x1] %v31
  $region1: #{tpu_custom_call.1} parent=0
    #allocation3 [shape = 'u8[16384]{0}', space=vmem, size = 0x4000, scoped, tag = 'input window, operand 5, single buffered']
    #allocation4 [shape = 's32[2]{0}', space=sflag, size = 0x8, scoped, tag = 'scoped memory for tpu_custom_call.1']
    #allocation5 [shape = 's32[2]{0}', space=sflag, size = 0x8, scoped, tag = 'scoped memory for tpu_custom_call.1']
    #allocation6 [shape = 'u8[16384]{0}', space=vmem, size = 0x4000, scoped, tag = 'input window, operand 6, single buffered']
    #allocation7 [shape = 's32[1]{0}', space=sflag, size = 0x4, scoped, tag = 'scoped memory for tpu_custom_call.1']
    #allocation8 [shape = 'u8[16384]{0}', space=vmem, size = 0x4000, scoped, tag = 'input window, operand 10, single buffered']
    #allocation9 [shape = 'u8[16384]{0}', space=vmem, size = 0x4000, scoped, tag = 'input window, operand 17, single buffered']
    #allocation10 [shape = 's32[1]{0}', space=sflag, size = 0x4, scoped, tag = 'scoped memory for tpu_custom_call.1']
    #allocation11 [shape = 'u8[16384]{0}', space=vmem, size = 0x4000, scoped, tag = 'output window, operand 0']
    #allocation12 [shape = 'u8[16384]{0}', space=vmem, size = 0x4000, scoped, tag = 'output window, operand 2']
    #allocation13 [shape = 's32[2]{0}', space=sflag, size = 0x8, scoped, tag = 'scoped memory for tpu_custom_call.1']
    %33 = vsyncpa [#allocation4], 0
    %34 = vsyncpa [#allocation7], 0
    %35 = vsyncpa [#allocation10], 0
    %36 = vsyncpa [#allocation5], 0
    %s37 = scalar_lea.sflag [#allocation5], 1
    %38 = vsyncpa %s37, 0
    %39 = vsyncpa [#allocation13], 0
    %s40 = scalar_lea.sflag [#allocation13], 1
    %41 = vsyncpa %s40, 0
    loop: start=0, step=1, limit=4
    $region2: #{tpu_custom_call.1} parent=1 // loop_pre_header
      _
    $region3: #{tpu_custom_call.1} parent=1 // loop_header
      %s43 = sphi 0, %s47
      %p44 = scmp.ge.s32.totalorder %s43, 4
      %s53 = sphi 0, %s55
      %s56 = sphi 0, %s53
      %s57 = sphi 0, %s56
      %s73 = sphi 0, %s57
      %s79 = sphi 0, %s81
      %s82 = sphi 0, %s79
      %s83 = sphi 0, %s82
      %s99 = sphi 0, %s83
      %s105 = sphi 0, %s107
      %s108 = sphi 0, %s105
      %s109 = sphi 0, %s108
      %s125 = sphi 0, %s109
      %s131 = sphi 0, %s133
      %s134 = sphi 0, %s131
      %s135 = sphi 0, %s134
      %s151 = sphi 0, %s135
      %s155 = sphi 0, %s155
      %s157 = sphi 0, %s155
      %s158 = sphi 0, %s157
      %s172 = sphi 0, %s158
      %s176 = sphi 0, %s176
      %s178 = sphi 0, %s176
      %s179 = sphi 0, %s178
      %s193 = sphi 0, %s179
      %s197 = sphi 0, %s197
      %s199 = sphi 0, %s197
      %s200 = sphi 0, %s199
      %s214 = sphi 0, %s200
      %s218 = sphi 0, %s218
      %s220 = sphi 0, %s218
      %s221 = sphi 0, %s220
      %s235 = sphi 0, %s221
      %s239 = sphi 0, %s239
      %s241 = sphi 0, %s239
      %s242 = sphi 0, %s241
      %s256 = sphi 0, %s242
      %s260 = sphi 0, %s260
      %s262 = sphi 0, %s260
      %s263 = sphi 0, %s262
      %s277 = sphi 0, %s263
      %s281 = sphi 0, %s281
      %s283 = sphi 0, %s281
      %s284 = sphi 0, %s283
      %s298 = sphi 0, %s284
      %s302 = sphi 0, %s302
      %s304 = sphi 0, %s302
      %s305 = sphi 0, %s304
      %s319 = sphi 0, %s305
      %s323 = sphi 0, %s323
      %s325 = sphi 0, %s323
      %s326 = sphi 0, %s325
      %s340 = sphi 0, %s326
      %s344 = sphi 0, %s344
      %s346 = sphi 0, %s344
      %s347 = sphi 0, %s346
      %s361 = sphi 0, %s347
      %s365 = sphi 0, %s365
      %s367 = sphi 0, %s365
      %s368 = sphi 0, %s367
      %s382 = sphi 0, %s368
      %s386 = sphi 0, %s386
      %s388 = sphi 0, %s386
      %s389 = sphi 0, %s388
      %s403 = sphi 0, %s389
      %s407 = sphi 0, %s407
      %s409 = sphi 0, %s407
      %s410 = sphi 0, %s409
      %s424 = sphi 0, %s410
      %s428 = sphi 0, %s428
      %s430 = sphi 0, %s428
      %s431 = sphi 0, %s430
      %s445 = sphi 0, %s431
      %s449 = sphi 0, %s449
      %s451 = sphi 0, %s449
      %s452 = sphi 0, %s451
      %s466 = sphi 0, %s452
      %s470 = sphi 0, %s470
      %s472 = sphi 0, %s470
      %s473 = sphi 0, %s472
      %s487 = sphi 0, %s473
      %s491 = sphi 0, %s491
      %s493 = sphi 0, %s491
      %s494 = sphi 0, %s493
      %s508 = sphi 0, %s494
      %s512 = sphi 0, %s512
      %s514 = sphi 0, %s512
      %s515 = sphi 0, %s514
      %s529 = sphi 0, %s515
      %s533 = sphi 0, %s533
      %s535 = sphi 0, %s533
      %s536 = sphi 0, %s535
      %s550 = sphi 0, %s536
      %s556 = sphi 0, %s558
      %s559 = sphi 0, %s556
      %s560 = sphi 0, %s559
      %s576 = sphi 0, %s560
      %s582 = sphi 0, %s584
      %s585 = sphi 0, %s582
      %s586 = sphi 0, %s585
      %s602 = sphi 0, %s586
      %s608 = sphi 0, %s610
      %s611 = sphi 0, %s608
      %s612 = sphi 0, %s611
      %s628 = sphi 0, %s612
    $region4: #{tpu_custom_call.1} parent=1 // loop_header_branch
      %46 = sbr.rel (%p44) target = $region8
    $region5: #{tpu_custom_call.1} parent=1 // loop_body
      %s48 = ssub.s32 %s43, 1
      %s49 = ssub.s32 %s43, 2
      %s50 = sadd.s32 %s43, 1
      %s51 = ssub.s32 %s43, %s50
      %p52 = scmp.eq.s32.totalorder %s51, 0
      %s54 = sadd.s32 %s53, 1
      %s55 = scalar_select %p52, %s53, %s54
      %p58 = pneg %p52
      %p59 = scmp.eq.s32.totalorder %s43, 1
      %p60 = por %p58, %p59
      %p61 = scmp.ne.s32.totalorder %s53, %s56
      %p62 = scmp.eq.s32.totalorder %s43, 0
      %p63 = por %p61, %p62
      %p64 = scmp.ne.s32.totalorder %s53, %s56
      %p65 = scmp.eq.s32.totalorder %s48, 1
      %p66 = por %p64, %p65
      %p67 = scmp.ne.s32.totalorder %s56, %s57
      %p68 = scmp.eq.s32.totalorder %s48, 0
      %p69 = por %p67, %p68
      %p70 = scmp.ne.s32.totalorder %s56, %s57
      %p71 = scmp.eq.s32.totalorder %s49, 1
      %p72 = por %p70, %p71
      %p74 = scmp.ne.s32.totalorder %s57, %s73
      %p75 = scmp.eq.s32.totalorder %s49, 0
      %p76 = por %p74, %p75
      %s77 = ssub.s32 %s43, %s50
      %p78 = scmp.eq.s32.totalorder %s77, 0
      %s80 = sadd.s32 %s79, 1
      %s81 = scalar_select %p78, %s79, %s80
      %p84 = pneg %p78
      %p85 = scmp.eq.s32.totalorder %s43, 1
      %p86 = por %p84, %p85
      %p87 = scmp.ne.s32.totalorder %s79, %s82
      %p88 = scmp.eq.s32.totalorder %s43, 0
      %p89 = por %p87, %p88
      %p90 = scmp.ne.s32.totalorder %s79, %s82
      %p91 = scmp.eq.s32.totalorder %s48, 1
      %p92 = por %p90, %p91
      %p93 = scmp.ne.s32.totalorder %s82, %s83
      %p94 = scmp.eq.s32.totalorder %s48, 0
      %p95 = por %p93, %p94
      %p96 = scmp.ne.s32.totalorder %s82, %s83
      %p97 = scmp.eq.s32.totalorder %s49, 1
      %p98 = por %p96, %p97
      %p100 = scmp.ne.s32.totalorder %s83, %s99
      %p101 = scmp.eq.s32.totalorder %s49, 0
      %p102 = por %p100, %p101
      %s103 = ssub.s32 %s43, %s50
      %p104 = scmp.eq.s32.totalorder %s103, 0
      %s106 = sadd.s32 %s105, 1
      %s107 = scalar_select %p104, %s105, %s106
      %p110 = pneg %p104
      %p111 = scmp.eq.s32.totalorder %s43, 1
      %p112 = por %p110, %p111
      %p113 = scmp.ne.s32.totalorder %s105, %s108
      %p114 = scmp.eq.s32.totalorder %s43, 0
      %p115 = por %p113, %p114
      %p116 = scmp.ne.s32.totalorder %s105, %s108
      %p117 = scmp.eq.s32.totalorder %s48, 1
      %p118 = por %p116, %p117
      %p119 = scmp.ne.s32.totalorder %s108, %s109
      %p120 = scmp.eq.s32.totalorder %s48, 0
      %p121 = por %p119, %p120
      %p122 = scmp.ne.s32.totalorder %s108, %s109
      %p123 = scmp.eq.s32.totalorder %s49, 1
      %p124 = por %p122, %p123
      %p126 = scmp.ne.s32.totalorder %s109, %s125
      %p127 = scmp.eq.s32.totalorder %s49, 0
      %p128 = por %p126, %p127
      %s129 = ssub.s32 %s43, %s50
      %p130 = scmp.eq.s32.totalorder %s129, 0
      %s132 = sadd.s32 %s131, 1
      %s133 = scalar_select %p130, %s131, %s132
      %p136 = pneg %p130
      %p137 = scmp.eq.s32.totalorder %s43, 1
      %p138 = por %p136, %p137
      %p139 = scmp.ne.s32.totalorder %s131, %s134
      %p140 = scmp.eq.s32.totalorder %s43, 0
      %p141 = por %p139, %p140
      %p142 = scmp.ne.s32.totalorder %s131, %s134
      %p143 = scmp.eq.s32.totalorder %s48, 1
      %p144 = por %p142, %p143
      %p145 = scmp.ne.s32.totalorder %s134, %s135
      %p146 = scmp.eq.s32.totalorder %s48, 0
      %p147 = por %p145, %p146
      %p148 = scmp.ne.s32.totalorder %s134, %s135
      %p149 = scmp.eq.s32.totalorder %s49, 1
      %p150 = por %p148, %p149
      %p152 = scmp.ne.s32.totalorder %s135, %s151
      %p153 = scmp.eq.s32.totalorder %s49, 0
      %p154 = por %p152, %p153
      %s156 = sadd.s32 %s155, 1
      %p159 = scmp.eq.s32.totalorder %s43, 1
      %p160 = scmp.ne.s32.totalorder %s155, %s157
      %p161 = scmp.eq.s32.totalorder %s43, 0
      %p162 = por %p160, %p161
      %p163 = scmp.ne.s32.totalorder %s155, %s157
      %p164 = scmp.eq.s32.totalorder %s48, 1
      %p165 = por %p163, %p164
      %p166 = scmp.ne.s32.totalorder %s157, %s158
      %p167 = scmp.eq.s32.totalorder %s48, 0
      %p168 = por %p166, %p167
      %p169 = scmp.ne.s32.totalorder %s157, %s158
      %p170 = scmp.eq.s32.totalorder %s49, 1
      %p171 = por %p169, %p170
      %p173 = scmp.ne.s32.totalorder %s158, %s172
      %p174 = scmp.eq.s32.totalorder %s49, 0
      %p175 = por %p173, %p174
      %s177 = sadd.s32 %s176, 1
      %p180 = scmp.eq.s32.totalorder %s43, 1
      %p181 = scmp.ne.s32.totalorder %s176, %s178
      %p182 = scmp.eq.s32.totalorder %s43, 0
      %p183 = por %p181, %p182
      %p184 = scmp.ne.s32.totalorder %s176, %s178
      %p185 = scmp.eq.s32.totalorder %s48, 1
      %p186 = por %p184, %p185
      %p187 = scmp.ne.s32.totalorder %s178, %s179
      %p188 = scmp.eq.s32.totalorder %s48, 0
      %p189 = por %p187, %p188
      %p190 = scmp.ne.s32.totalorder %s178, %s179
      %p191 = scmp.eq.s32.totalorder %s49, 1
      %p192 = por %p190, %p191
      %p194 = scmp.ne.s32.totalorder %s179, %s193
      %p195 = scmp.eq.s32.totalorder %s49, 0
      %p196 = por %p194, %p195
      %s198 = sadd.s32 %s197, 1
      %p201 = scmp.eq.s32.totalorder %s43, 1
      %p202 = scmp.ne.s32.totalorder %s197, %s199
      %p203 = scmp.eq.s32.totalorder %s43, 0
      %p204 = por %p202, %p203
      %p205 = scmp.ne.s32.totalorder %s197, %s199
      %p206 = scmp.eq.s32.totalorder %s48, 1
      %p207 = por %p205, %p206
      %p208 = scmp.ne.s32.totalorder %s199, %s200
      %p209 = scmp.eq.s32.totalorder %s48, 0
      %p210 = por %p208, %p209
      %p211 = scmp.ne.s32.totalorder %s199, %s200
      %p212 = scmp.eq.s32.totalorder %s49, 1
      %p213 = por %p211, %p212
      %p215 = scmp.ne.s32.totalorder %s200, %s214
      %p216 = scmp.eq.s32.totalorder %s49, 0
      %p217 = por %p215, %p216
      %s219 = sadd.s32 %s218, 1
      %p222 = scmp.eq.s32.totalorder %s43, 1
      %p223 = scmp.ne.s32.totalorder %s218, %s220
      %p224 = scmp.eq.s32.totalorder %s43, 0
      %p225 = por %p223, %p224
      %p226 = scmp.ne.s32.totalorder %s218, %s220
      %p227 = scmp.eq.s32.totalorder %s48, 1
      %p228 = por %p226, %p227
      %p229 = scmp.ne.s32.totalorder %s220, %s221
      %p230 = scmp.eq.s32.totalorder %s48, 0
      %p231 = por %p229, %p230
      %p232 = scmp.ne.s32.totalorder %s220, %s221
      %p233 = scmp.eq.s32.totalorder %s49, 1
      %p234 = por %p232, %p233
      %p236 = scmp.ne.s32.totalorder %s221, %s235
      %p237 = scmp.eq.s32.totalorder %s49, 0
      %p238 = por %p236, %p237
      %s240 = sadd.s32 %s239, 1
      %p243 = scmp.eq.s32.totalorder %s43, 1
      %p244 = scmp.ne.s32.totalorder %s239, %s241
      %p245 = scmp.eq.s32.totalorder %s43, 0
      %p246 = por %p244, %p245
      %p247 = scmp.ne.s32.totalorder %s239, %s241
      %p248 = scmp.eq.s32.totalorder %s48, 1
      %p249 = por %p247, %p248
      %p250 = scmp.ne.s32.totalorder %s241, %s242
      %p251 = scmp.eq.s32.totalorder %s48, 0
      %p252 = por %p250, %p251
      %p253 = scmp.ne.s32.totalorder %s241, %s242
      %p254 = scmp.eq.s32.totalorder %s49, 1
      %p255 = por %p253, %p254
      %p257 = scmp.ne.s32.totalorder %s242, %s256
      %p258 = scmp.eq.s32.totalorder %s49, 0
      %p259 = por %p257, %p258
      %s261 = sadd.s32 %s260, 1
      %p264 = scmp.eq.s32.totalorder %s43, 1
      %p265 = scmp.ne.s32.totalorder %s260, %s262
      %p266 = scmp.eq.s32.totalorder %s43, 0
      %p267 = por %p265, %p266
      %p268 = scmp.ne.s32.totalorder %s260, %s262
      %p269 = scmp.eq.s32.totalorder %s48, 1
      %p270 = por %p268, %p269
      %p271 = scmp.ne.s32.totalorder %s262, %s263
      %p272 = scmp.eq.s32.totalorder %s48, 0
      %p273 = por %p271, %p272
      %p274 = scmp.ne.s32.totalorder %s262, %s263
      %p275 = scmp.eq.s32.totalorder %s49, 1
      %p276 = por %p274, %p275
      %p278 = scmp.ne.s32.totalorder %s263, %s277
      %p279 = scmp.eq.s32.totalorder %s49, 0
      %p280 = por %p278, %p279
      %s282 = sadd.s32 %s281, 1
      %p285 = scmp.eq.s32.totalorder %s43, 1
      %p286 = scmp.ne.s32.totalorder %s281, %s283
      %p287 = scmp.eq.s32.totalorder %s43, 0
      %p288 = por %p286, %p287
      %p289 = scmp.ne.s32.totalorder %s281, %s283
      %p290 = scmp.eq.s32.totalorder %s48, 1
      %p291 = por %p289, %p290
      %p292 = scmp.ne.s32.totalorder %s283, %s284
      %p293 = scmp.eq.s32.totalorder %s48, 0
      %p294 = por %p292, %p293
      %p295 = scmp.ne.s32.totalorder %s283, %s284
      %p296 = scmp.eq.s32.totalorder %s49, 1
      %p297 = por %p295, %p296
      %p299 = scmp.ne.s32.totalorder %s284, %s298
      %p300 = scmp.eq.s32.totalorder %s49, 0
      %p301 = por %p299, %p300
      %s303 = sadd.s32 %s302, 1
      %p306 = scmp.eq.s32.totalorder %s43, 1
      %p307 = scmp.ne.s32.totalorder %s302, %s304
      %p308 = scmp.eq.s32.totalorder %s43, 0
      %p309 = por %p307, %p308
      %p310 = scmp.ne.s32.totalorder %s302, %s304
      %p311 = scmp.eq.s32.totalorder %s48, 1
      %p312 = por %p310, %p311
      %p313 = scmp.ne.s32.totalorder %s304, %s305
      %p314 = scmp.eq.s32.totalorder %s48, 0
      %p315 = por %p313, %p314
      %p316 = scmp.ne.s32.totalorder %s304, %s305
      %p317 = scmp.eq.s32.totalorder %s49, 1
      %p318 = por %p316, %p317
      %p320 = scmp.ne.s32.totalorder %s305, %s319
      %p321 = scmp.eq.s32.totalorder %s49, 0
      %p322 = por %p320, %p321
      %s324 = sadd.s32 %s323, 1
      %p327 = scmp.eq.s32.totalorder %s43, 1
      %p328 = scmp.ne.s32.totalorder %s323, %s325
      %p329 = scmp.eq.s32.totalorder %s43, 0
      %p330 = por %p328, %p329
      %p331 = scmp.ne.s32.totalorder %s323, %s325
      %p332 = scmp.eq.s32.totalorder %s48, 1
      %p333 = por %p331, %p332
      %p334 = scmp.ne.s32.totalorder %s325, %s326
      %p335 = scmp.eq.s32.totalorder %s48, 0
      %p336 = por %p334, %p335
      %p337 = scmp.ne.s32.totalorder %s325, %s326
      %p338 = scmp.eq.s32.totalorder %s49, 1
      %p339 = por %p337, %p338
      %p341 = scmp.ne.s32.totalorder %s326, %s340
      %p342 = scmp.eq.s32.totalorder %s49, 0
      %p343 = por %p341, %p342
      %s345 = sadd.s32 %s344, 1
      %p348 = scmp.eq.s32.totalorder %s43, 1
      %p349 = scmp.ne.s32.totalorder %s344, %s346
      %p350 = scmp.eq.s32.totalorder %s43, 0
      %p351 = por %p349, %p350
      %p352 = scmp.ne.s32.totalorder %s344, %s346
      %p353 = scmp.eq.s32.totalorder %s48, 1
      %p354 = por %p352, %p353
      %p355 = scmp.ne.s32.totalorder %s346, %s347
      %p356 = scmp.eq.s32.totalorder %s48, 0
      %p357 = por %p355, %p356
      %p358 = scmp.ne.s32.totalorder %s346, %s347
      %p359 = scmp.eq.s32.totalorder %s49, 1
      %p360 = por %p358, %p359
      %p362 = scmp.ne.s32.totalorder %s347, %s361
      %p363 = scmp.eq.s32.totalorder %s49, 0
      %p364 = por %p362, %p363
      %s366 = sadd.s32 %s365, 1
      %p369 = scmp.eq.s32.totalorder %s43, 1
      %p370 = scmp.ne.s32.totalorder %s365, %s367
      %p371 = scmp.eq.s32.totalorder %s43, 0
      %p372 = por %p370, %p371
      %p373 = scmp.ne.s32.totalorder %s365, %s367
      %p374 = scmp.eq.s32.totalorder %s48, 1
      %p375 = por %p373, %p374
      %p376 = scmp.ne.s32.totalorder %s367, %s368
      %p377 = scmp.eq.s32.totalorder %s48, 0
      %p378 = por %p376, %p377
      %p379 = scmp.ne.s32.totalorder %s367, %s368
      %p380 = scmp.eq.s32.totalorder %s49, 1
      %p381 = por %p379, %p380
      %p383 = scmp.ne.s32.totalorder %s368, %s382
      %p384 = scmp.eq.s32.totalorder %s49, 0
      %p385 = por %p383, %p384
      %s387 = sadd.s32 %s386, 1
      %p390 = scmp.eq.s32.totalorder %s43, 1
      %p391 = scmp.ne.s32.totalorder %s386, %s388
      %p392 = scmp.eq.s32.totalorder %s43, 0
      %p393 = por %p391, %p392
      %p394 = scmp.ne.s32.totalorder %s386, %s388
      %p395 = scmp.eq.s32.totalorder %s48, 1
      %p396 = por %p394, %p395
      %p397 = scmp.ne.s32.totalorder %s388, %s389
      %p398 = scmp.eq.s32.totalorder %s48, 0
      %p399 = por %p397, %p398
      %p400 = scmp.ne.s32.totalorder %s388, %s389
      %p401 = scmp.eq.s32.totalorder %s49, 1
      %p402 = por %p400, %p401
      %p404 = scmp.ne.s32.totalorder %s389, %s403
      %p405 = scmp.eq.s32.totalorder %s49, 0
      %p406 = por %p404, %p405
      %s408 = sadd.s32 %s407, 1
      %p411 = scmp.eq.s32.totalorder %s43, 1
      %p412 = scmp.ne.s32.totalorder %s407, %s409
      %p413 = scmp.eq.s32.totalorder %s43, 0
      %p414 = por %p412, %p413
      %p415 = scmp.ne.s32.totalorder %s407, %s409
      %p416 = scmp.eq.s32.totalorder %s48, 1
      %p417 = por %p415, %p416
      %p418 = scmp.ne.s32.totalorder %s409, %s410
      %p419 = scmp.eq.s32.totalorder %s48, 0
      %p420 = por %p418, %p419
      %p421 = scmp.ne.s32.totalorder %s409, %s410
      %p422 = scmp.eq.s32.totalorder %s49, 1
      %p423 = por %p421, %p422
      %p425 = scmp.ne.s32.totalorder %s410, %s424
      %p426 = scmp.eq.s32.totalorder %s49, 0
      %p427 = por %p425, %p426
      %s429 = sadd.s32 %s428, 1
      %p432 = scmp.eq.s32.totalorder %s43, 1
      %p433 = scmp.ne.s32.totalorder %s428, %s430
      %p434 = scmp.eq.s32.totalorder %s43, 0
      %p435 = por %p433, %p434
      %p436 = scmp.ne.s32.totalorder %s428, %s430
      %p437 = scmp.eq.s32.totalorder %s48, 1
      %p438 = por %p436, %p437
      %p439 = scmp.ne.s32.totalorder %s430, %s431
      %p440 = scmp.eq.s32.totalorder %s48, 0
      %p441 = por %p439, %p440
      %p442 = scmp.ne.s32.totalorder %s430, %s431
      %p443 = scmp.eq.s32.totalorder %s49, 1
      %p444 = por %p442, %p443
      %p446 = scmp.ne.s32.totalorder %s431, %s445
      %p447 = scmp.eq.s32.totalorder %s49, 0
      %p448 = por %p446, %p447
      %s450 = sadd.s32 %s449, 1
      %p453 = scmp.eq.s32.totalorder %s43, 1
      %p454 = scmp.ne.s32.totalorder %s449, %s451
      %p455 = scmp.eq.s32.totalorder %s43, 0
      %p456 = por %p454, %p455
      %p457 = scmp.ne.s32.totalorder %s449, %s451
      %p458 = scmp.eq.s32.totalorder %s48, 1
      %p459 = por %p457, %p458
      %p460 = scmp.ne.s32.totalorder %s451, %s452
      %p461 = scmp.eq.s32.totalorder %s48, 0
      %p462 = por %p460, %p461
      %p463 = scmp.ne.s32.totalorder %s451, %s452
      %p464 = scmp.eq.s32.totalorder %s49, 1
      %p465 = por %p463, %p464
      %p467 = scmp.ne.s32.totalorder %s452, %s466
      %p468 = scmp.eq.s32.totalorder %s49, 0
      %p469 = por %p467, %p468
      %s471 = sadd.s32 %s470, 1
      %p474 = scmp.eq.s32.totalorder %s43, 1
      %p475 = scmp.ne.s32.totalorder %s470, %s472
      %p476 = scmp.eq.s32.totalorder %s43, 0
      %p477 = por %p475, %p476
      %p478 = scmp.ne.s32.totalorder %s470, %s472
      %p479 = scmp.eq.s32.totalorder %s48, 1
      %p480 = por %p478, %p479
      %p481 = scmp.ne.s32.totalorder %s472, %s473
      %p482 = scmp.eq.s32.totalorder %s48, 0
      %p483 = por %p481, %p482
      %p484 = scmp.ne.s32.totalorder %s472, %s473
      %p485 = scmp.eq.s32.totalorder %s49, 1
      %p486 = por %p484, %p485
      %p488 = scmp.ne.s32.totalorder %s473, %s487
      %p489 = scmp.eq.s32.totalorder %s49, 0
      %p490 = por %p488, %p489
      %s492 = sadd.s32 %s491, 1
      %p495 = scmp.eq.s32.totalorder %s43, 1
      %p496 = scmp.ne.s32.totalorder %s491, %s493
      %p497 = scmp.eq.s32.totalorder %s43, 0
      %p498 = por %p496, %p497
      %p499 = scmp.ne.s32.totalorder %s491, %s493
      %p500 = scmp.eq.s32.totalorder %s48, 1
      %p501 = por %p499, %p500
      %p502 = scmp.ne.s32.totalorder %s493, %s494
      %p503 = scmp.eq.s32.totalorder %s48, 0
      %p504 = por %p502, %p503
      %p505 = scmp.ne.s32.totalorder %s493, %s494
      %p506 = scmp.eq.s32.totalorder %s49, 1
      %p507 = por %p505, %p506
      %p509 = scmp.ne.s32.totalorder %s494, %s508
      %p510 = scmp.eq.s32.totalorder %s49, 0
      %p511 = por %p509, %p510
      %s513 = sadd.s32 %s512, 1
      %p516 = scmp.eq.s32.totalorder %s43, 1
      %p517 = scmp.ne.s32.totalorder %s512, %s514
      %p518 = scmp.eq.s32.totalorder %s43, 0
      %p519 = por %p517, %p518
      %p520 = scmp.ne.s32.totalorder %s512, %s514
      %p521 = scmp.eq.s32.totalorder %s48, 1
      %p522 = por %p520, %p521
      %p523 = scmp.ne.s32.totalorder %s514, %s515
      %p524 = scmp.eq.s32.totalorder %s48, 0
      %p525 = por %p523, %p524
      %p526 = scmp.ne.s32.totalorder %s514, %s515
      %p527 = scmp.eq.s32.totalorder %s49, 1
      %p528 = por %p526, %p527
      %p530 = scmp.ne.s32.totalorder %s515, %s529
      %p531 = scmp.eq.s32.totalorder %s49, 0
      %p532 = por %p530, %p531
      %s534 = sadd.s32 %s533, 1
      %p537 = scmp.eq.s32.totalorder %s43, 1
      %p538 = scmp.ne.s32.totalorder %s533, %s535
      %p539 = scmp.eq.s32.totalorder %s43, 0
      %p540 = por %p538, %p539
      %p541 = scmp.ne.s32.totalorder %s533, %s535
      %p542 = scmp.eq.s32.totalorder %s48, 1
      %p543 = por %p541, %p542
      %p544 = scmp.ne.s32.totalorder %s535, %s536
      %p545 = scmp.eq.s32.totalorder %s48, 0
      %p546 = por %p544, %p545
      %p547 = scmp.ne.s32.totalorder %s535, %s536
      %p548 = scmp.eq.s32.totalorder %s49, 1
      %p549 = por %p547, %p548
      %p551 = scmp.ne.s32.totalorder %s536, %s550
      %p552 = scmp.eq.s32.totalorder %s49, 0
      %p553 = por %p551, %p552
      %s554 = ssub.s32 %s43, %s50
      %p555 = scmp.eq.s32.totalorder %s554, 0
      %s557 = sadd.s32 %s556, 1
      %s558 = scalar_select %p555, %s556, %s557
      %p561 = pneg %p555
      %p562 = scmp.eq.s32.totalorder %s43, 1
      %p563 = por %p561, %p562
      %p564 = scmp.ne.s32.totalorder %s556, %s559
      %p565 = scmp.eq.s32.totalorder %s43, 0
      %p566 = por %p564, %p565
      %p567 = scmp.ne.s32.totalorder %s556, %s559
      %p568 = scmp.eq.s32.totalorder %s48, 1
      %p569 = por %p567, %p568
      %p570 = scmp.ne.s32.totalorder %s559, %s560
      %p571 = scmp.eq.s32.totalorder %s48, 0
      %p572 = por %p570, %p571
      %p573 = scmp.ne.s32.totalorder %s559, %s560
      %p574 = scmp.eq.s32.totalorder %s49, 1
      %p575 = por %p573, %p574
      %p577 = scmp.ne.s32.totalorder %s560, %s576
      %p578 = scmp.eq.s32.totalorder %s49, 0
      %p579 = por %p577, %p578
      %s580 = ssub.s32 %s43, %s50
      %p581 = scmp.eq.s32.totalorder %s580, 0
      %s583 = sadd.s32 %s582, 1
      %s584 = scalar_select %p581, %s582, %s583
      %p587 = pneg %p581
      %p588 = scmp.eq.s32.totalorder %s43, 1
      %p589 = por %p587, %p588
      %p590 = scmp.ne.s32.totalorder %s582, %s585
      %p591 = scmp.eq.s32.totalorder %s43, 0
      %p592 = por %p590, %p591
      %p593 = scmp.ne.s32.totalorder %s582, %s585
      %p594 = scmp.eq.s32.totalorder %s48, 1
      %p595 = por %p593, %p594
      %p596 = scmp.ne.s32.totalorder %s585, %s586
      %p597 = scmp.eq.s32.totalorder %s48, 0
      %p598 = por %p596, %p597
      %p599 = scmp.ne.s32.totalorder %s585, %s586
      %p600 = scmp.eq.s32.totalorder %s49, 1
      %p601 = por %p599, %p600
      %p603 = scmp.ne.s32.totalorder %s586, %s602
      %p604 = scmp.eq.s32.totalorder %s49, 0
      %p605 = por %p603, %p604
      %s606 = ssub.s32 %s43, %s50
      %p607 = scmp.eq.s32.totalorder %s606, 0
      %s609 = sadd.s32 %s608, 1
      %s610 = scalar_select %p607, %s608, %s609
      %p613 = pneg %p607
      %p614 = scmp.eq.s32.totalorder %s43, 1
      %p615 = por %p613, %p614
      %p616 = scmp.ne.s32.totalorder %s608, %s611
      %p617 = scmp.eq.s32.totalorder %s43, 0
      %p618 = por %p616, %p617
      %p619 = scmp.ne.s32.totalorder %s608, %s611
      %p620 = scmp.eq.s32.totalorder %s48, 1
      %p621 = por %p619, %p620
      %p622 = scmp.ne.s32.totalorder %s611, %s612
      %p623 = scmp.eq.s32.totalorder %s48, 0
      %p624 = por %p622, %p623
      %p625 = scmp.ne.s32.totalorder %s611, %s612
      %p626 = scmp.eq.s32.totalorder %s49, 1
      %p627 = por %p625, %p626
      %p629 = scmp.ne.s32.totalorder %s612, %s628
      %p630 = scmp.eq.s32.totalorder %s49, 0
      %p631 = por %p629, %p630
      %p632 = scmp.le.s32.totalorder 1, %s43
      %p633 = scmp.lt.s32.totalorder %s43, 3
      %p634 = pnand %p632, %p633
      %p635 = pneg %p634
      // Predicated region
      $region9: #{tpu_custom_call.1} parent=5 // pred_check
        _
      $region10: #{tpu_custom_call.1} parent=5 // pred_check_branch
        %637 = sbr.rel (%p634) target = $region12
      $region11: #{tpu_custom_call.1} parent=5 // pred_region
        %s638 = ssub.s32 %s43, 1
        // Predicated region
        $region13: #{tpu_custom_call.1} parent=11 // pred_check
          %p639 = pneg %p168
        $region14: #{tpu_custom_call.1} parent=11 // pred_check_branch
          %641 = sbr.rel (%p639) target = $region16
        $region15: #{tpu_custom_call.1} parent=11 // pred_region
          _
        $region16: #{tpu_custom_call.1} parent=11 // pred_fallthru
          _
        // Predicated region
        $region17: #{tpu_custom_call.1} parent=11 // pred_check
          %p642 = pneg %p189
        $region18: #{tpu_custom_call.1} parent=11 // pred_check_branch
          %644 = sbr.rel (%p642) target = $region20
        $region19: #{tpu_custom_call.1} parent=11 // pred_region
          %646 = vsyncadd [#allocation4], 0
          %s647 = sshll.u32 %s5, 4
          %s648 = int_to_ptr.hbm [resolvable:$true] %s647
          %s649 = sshll.u32 [#allocation3], 4
          %s650 = int_to_ptr.vmem [resolvable:$true] %s649
          %655 = dma.hbm_to_vmem [thread:$0]  %s648, 512, %s650, [#allocation4], 128, 128, 8
        $region20: #{tpu_custom_call.1} parent=11 // pred_fallthru
          _
        // Predicated region
        $region21: #{tpu_custom_call.1} parent=11 // pred_check
          %p656 = pneg %p210
        $region22: #{tpu_custom_call.1} parent=11 // pred_check_branch
          %658 = sbr.rel (%p656) target = $region24
        $region23: #{tpu_custom_call.1} parent=11 // pred_region
          %660 = vsyncadd [#allocation7], 0
          %s661 = sshll.u32 %s6, 4
          %s662 = int_to_ptr.hbm [resolvable:$true] %s661
          %s663 = sshll.u32 [#allocation6], 4
          %s664 = int_to_ptr.vmem [resolvable:$true] %s663
          %669 = dma.hbm_to_vmem [thread:$0]  %s662, 512, %s664, [#allocation7], 128, 128, 8
        $region24: #{tpu_custom_call.1} parent=11 // pred_fallthru
          _
        // Predicated region
        $region25: #{tpu_custom_call.1} parent=11 // pred_check
          %p670 = pneg %p231
        $region26: #{tpu_custom_call.1} parent=11 // pred_check_branch
          %672 = sbr.rel (%p670) target = $region28
        $region27: #{tpu_custom_call.1} parent=11 // pred_region
          _
        $region28: #{tpu_custom_call.1} parent=11 // pred_fallthru
          _
        // Predicated region
        $region29: #{tpu_custom_call.1} parent=11 // pred_check
          %p673 = pneg %p252
        $region30: #{tpu_custom_call.1} parent=11 // pred_check_branch
          %675 = sbr.rel (%p673) target = $region32
        $region31: #{tpu_custom_call.1} parent=11 // pred_region
          _
        $region32: #{tpu_custom_call.1} parent=11 // pred_fallthru
          _
        // Predicated region
        $region33: #{tpu_custom_call.1} parent=11 // pred_check
          %p676 = pneg %p273
        $region34: #{tpu_custom_call.1} parent=11 // pred_check_branch
          %678 = sbr.rel (%p676) target = $region36
        $region35: #{tpu_custom_call.1} parent=11 // pred_region
          _
        $region36: #{tpu_custom_call.1} parent=11 // pred_fallthru
          _
        // Predicated region
        $region37: #{tpu_custom_call.1} parent=11 // pred_check
          %p679 = pneg %p294
        $region38: #{tpu_custom_call.1} parent=11 // pred_check_branch
          %681 = sbr.rel (%p679) target = $region40
        $region39: #{tpu_custom_call.1} parent=11 // pred_region
          %683 = vsyncadd [#allocation7], 0
          %s684 = sshll.u32 %s10, 4
          %s685 = int_to_ptr.hbm [resolvable:$true] %s684
          %s686 = sshll.u32 [#allocation8], 4
          %s687 = int_to_ptr.vmem [resolvable:$true] %s686
          %692 = dma.hbm_to_vmem [thread:$0]  %s685, 512, %s687, [#allocation7], 128, 128, 8
        $region40: #{tpu_custom_call.1} parent=11 // pred_fallthru
          _
        // Predicated region
        $region41: #{tpu_custom_call.1} parent=11 // pred_check
          %p693 = pneg %p315
        $region42: #{tpu_custom_call.1} parent=11 // pred_check_branch
          %695 = sbr.rel (%p693) target = $region44
        $region43: #{tpu_custom_call.1} parent=11 // pred_region
          _
        $region44: #{tpu_custom_call.1} parent=11 // pred_fallthru
          _
        // Predicated region
        $region45: #{tpu_custom_call.1} parent=11 // pred_check
          %p696 = pneg %p336
        $region46: #{tpu_custom_call.1} parent=11 // pred_check_branch
          %698 = sbr.rel (%p696) target = $region48
        $region47: #{tpu_custom_call.1} parent=11 // pred_region
          _
        $region48: #{tpu_custom_call.1} parent=11 // pred_fallthru
          _
        // Predicated region
        $region49: #{tpu_custom_call.1} parent=11 // pred_check
          %p699 = pneg %p357
        $region50: #{tpu_custom_call.1} parent=11 // pred_check_branch
          %701 = sbr.rel (%p699) target = $region52
        $region51: #{tpu_custom_call.1} parent=11 // pred_region
          _
        $region52: #{tpu_custom_call.1} parent=11 // pred_fallthru
          _
        // Predicated region
        $region53: #{tpu_custom_call.1} parent=11 // pred_check
          %p702 = pneg %p378
        $region54: #{tpu_custom_call.1} parent=11 // pred_check_branch
          %704 = sbr.rel (%p702) target = $region56
        $region55: #{tpu_custom_call.1} parent=11 // pred_region
          _
        $region56: #{tpu_custom_call.1} parent=11 // pred_fallthru
          _
        // Predicated region
        $region57: #{tpu_custom_call.1} parent=11 // pred_check
          %p705 = pneg %p399
        $region58: #{tpu_custom_call.1} parent=11 // pred_check_branch
          %707 = sbr.rel (%p705) target = $region60
        $region59: #{tpu_custom_call.1} parent=11 // pred_region
          _
        $region60: #{tpu_custom_call.1} parent=11 // pred_fallthru
          _
        // Predicated region
        $region61: #{tpu_custom_call.1} parent=11 // pred_check
          %p708 = pneg %p420
        $region62: #{tpu_custom_call.1} parent=11 // pred_check_branch
          %710 = sbr.rel (%p708) target = $region64
        $region63: #{tpu_custom_call.1} parent=11 // pred_region
          _
        $region64: #{tpu_custom_call.1} parent=11 // pred_fallthru
          _
        // Predicated region
        $region65: #{tpu_custom_call.1} parent=11 // pred_check
          %p711 = pneg %p441
        $region66: #{tpu_custom_call.1} parent=11 // pred_check_branch
          %713 = sbr.rel (%p711) target = $region68
        $region67: #{tpu_custom_call.1} parent=11 // pred_region
          %715 = vsyncadd [#allocation10], 0
          %s716 = sshll.u32 %s17, 4
          %s717 = int_to_ptr.hbm [resolvable:$true] %s716
          %s718 = sshll.u32 [#allocation9], 4
          %s719 = int_to_ptr.vmem [resolvable:$true] %s718
          %724 = dma.hbm_to_vmem [thread:$0]  %s717, 512, %s719, [#allocation10], 128, 128, 8
        $region68: #{tpu_custom_call.1} parent=11 // pred_fallthru
          _
        // Predicated region
        $region69: #{tpu_custom_call.1} parent=11 // pred_check
          %p725 = pneg %p462
        $region70: #{tpu_custom_call.1} parent=11 // pred_check_branch
          %727 = sbr.rel (%p725) target = $region72
        $region71: #{tpu_custom_call.1} parent=11 // pred_region
          _
        $region72: #{tpu_custom_call.1} parent=11 // pred_fallthru
          _
        // Predicated region
        $region73: #{tpu_custom_call.1} parent=11 // pred_check
          %p728 = pneg %p483
        $region74: #{tpu_custom_call.1} parent=11 // pred_check_branch
          %730 = sbr.rel (%p728) target = $region76
        $region75: #{tpu_custom_call.1} parent=11 // pred_region
          _
        $region76: #{tpu_custom_call.1} parent=11 // pred_fallthru
          _
        // Predicated region
        $region77: #{tpu_custom_call.1} parent=11 // pred_check
          %p731 = pneg %p504
        $region78: #{tpu_custom_call.1} parent=11 // pred_check_branch
          %733 = sbr.rel (%p731) target = $region80
        $region79: #{tpu_custom_call.1} parent=11 // pred_region
          _
        $region80: #{tpu_custom_call.1} parent=11 // pred_fallthru
          _
        // Predicated region
        $region81: #{tpu_custom_call.1} parent=11 // pred_check
          %p734 = pneg %p525
        $region82: #{tpu_custom_call.1} parent=11 // pred_check_branch
          %736 = sbr.rel (%p734) target = $region84
        $region83: #{tpu_custom_call.1} parent=11 // pred_region
          _
        $region84: #{tpu_custom_call.1} parent=11 // pred_fallthru
          _
        // Predicated region
        $region85: #{tpu_custom_call.1} parent=11 // pred_check
          %p737 = pneg %p546
        $region86: #{tpu_custom_call.1} parent=11 // pred_check_branch
          %739 = sbr.rel (%p737) target = $region88
        $region87: #{tpu_custom_call.1} parent=11 // pred_region
          _
        $region88: #{tpu_custom_call.1} parent=11 // pred_fallthru
          _
      $region12: #{tpu_custom_call.1} parent=5 // pred_fallthru
        _
      %p740 = scmp.lt.s32.totalorder %s43, 2
      // Predicated region
      $region89: #{tpu_custom_call.1} parent=5 // pred_check
        %p741 = pneg %p740
      $region90: #{tpu_custom_call.1} parent=5 // pred_check_branch
        %743 = sbr.rel (%p741) target = $region92
      $region91: #{tpu_custom_call.1} parent=5 // pred_region
        // Predicated region
        $region93: #{tpu_custom_call.1} parent=91 // pred_check
          %p744 = pneg %p63
        $region94: #{tpu_custom_call.1} parent=91 // pred_check_branch
          %746 = sbr.rel (%p744) target = $region96
        $region95: #{tpu_custom_call.1} parent=91 // pred_region
          %s747 = smul.u32 2, %s43
          %p748 = scmp.lt.s32.totalorder %s747, 3
          %s749 = scalar_select %p748, %s747, 3
          %s750 = smul.addr %s749, 8
          %s751 = scalar_lea.vmem %s0, %s750
          %s752 = smul.u32 2, %s43
        $region96: #{tpu_custom_call.1} parent=91 // pred_fallthru
          _
        // Predicated region
        $region97: #{tpu_custom_call.1} parent=91 // pred_check
          %p753 = pneg %p89
        $region98: #{tpu_custom_call.1} parent=91 // pred_check_branch
          %755 = sbr.rel (%p753) target = $region100
        $region99: #{tpu_custom_call.1} parent=91 // pred_region
          %s756 = smul.u32 2, %s43
          %p757 = scmp.lt.s32.totalorder %s756, 3
          %s758 = scalar_select %p757, %s756, 3
          %s759 = smul.addr %s758, 8
          %s760 = scalar_lea.vmem %s1, %s759
          %s761 = smul.u32 2, %s43
        $region100: #{tpu_custom_call.1} parent=91 // pred_fallthru
          _
        // Predicated region
        $region101: #{tpu_custom_call.1} parent=91 // pred_check
          %p762 = pneg %p115
        $region102: #{tpu_custom_call.1} parent=91 // pred_check_branch
          %764 = sbr.rel (%p762) target = $region104
        $region103: #{tpu_custom_call.1} parent=91 // pred_region
          %s765 = smul.u32 2, %s43
          %p766 = scmp.lt.s32.totalorder %s765, 3
          %s767 = scalar_select %p766, %s765, 3
          %s768 = scalar_lea.vmem %s2, %s767
          %s769 = smul.u32 2, %s43
        $region104: #{tpu_custom_call.1} parent=91 // pred_fallthru
          _
        // Predicated region
        $region105: #{tpu_custom_call.1} parent=91 // pred_check
          %p770 = pneg %p141
        $region106: #{tpu_custom_call.1} parent=91 // pred_check_branch
          %772 = sbr.rel (%p770) target = $region108
        $region107: #{tpu_custom_call.1} parent=91 // pred_region
          %s773 = smul.u32 2, %s43
          %p774 = scmp.lt.s32.totalorder %s773, 3
          %s775 = scalar_select %p774, %s773, 3
          %s776 = scalar_lea.vmem %s3, %s775
          %s777 = smul.u32 2, %s43
        $region108: #{tpu_custom_call.1} parent=91 // pred_fallthru
          _
      $region92: #{tpu_custom_call.1} parent=5 // pred_fallthru
        _
      %p778 = scmp.le.s32.totalorder 1, %s43
      %p779 = scmp.lt.s32.totalorder %s43, 3
      %p780 = pnand %p778, %p779
      %p781 = pneg %p780
      // Predicated region
      $region109: #{tpu_custom_call.1} parent=5 // pred_check
        _
      $region110: #{tpu_custom_call.1} parent=5 // pred_check_branch
        %783 = sbr.rel (%p780) target = $region112
      $region111: #{tpu_custom_call.1} parent=5 // pred_region
        %s784 = ssub.s32 %s43, 1
        // Predicated region
        $region113: #{tpu_custom_call.1} parent=111 // pred_check
          %p785 = pneg %p189
        $region114: #{tpu_custom_call.1} parent=111 // pred_check_branch
          %787 = sbr.rel (%p785) target = $region116
        $region115: #{tpu_custom_call.1} parent=111 // pred_region
          %789 = dma.done [#allocation4], 512
        $region116: #{tpu_custom_call.1} parent=111 // pred_fallthru
          _
        // Predicated region
        $region117: #{tpu_custom_call.1} parent=111 // pred_check
          %p790 = pneg %p210
        $region118: #{tpu_custom_call.1} parent=111 // pred_check_branch
          %792 = sbr.rel (%p790) target = $region120
        $region119: #{tpu_custom_call.1} parent=111 // pred_region
          %794 = dma.done [#allocation7], 512
        $region120: #{tpu_custom_call.1} parent=111 // pred_fallthru
          _
        // Predicated region
        $region121: #{tpu_custom_call.1} parent=111 // pred_check
          %p795 = pneg %p294
        $region122: #{tpu_custom_call.1} parent=111 // pred_check_branch
          %797 = sbr.rel (%p795) target = $region124
        $region123: #{tpu_custom_call.1} parent=111 // pred_region
          %799 = dma.done [#allocation7], 512
        $region124: #{tpu_custom_call.1} parent=111 // pred_fallthru
          _
        // Predicated region
        $region125: #{tpu_custom_call.1} parent=111 // pred_check
          %p800 = pneg %p441
        $region126: #{tpu_custom_call.1} parent=111 // pred_check_branch
          %802 = sbr.rel (%p800) target = $region128
        $region127: #{tpu_custom_call.1} parent=111 // pred_region
          %804 = dma.done [#allocation10], 512
        $region128: #{tpu_custom_call.1} parent=111 // pred_fallthru
          _
        %s805 = smul.u32 2, %s48
        %p806 = scmp.lt.s32.totalorder %s805, 3
        %s807 = scalar_select %p806, %s805, 3
        %s808 = smul.addr %s807, 8
        %s809 = scalar_lea.vmem %s0, %s808
        %p810 = pneg %p69
        %p811 = pneg %p66
        %s812 = smul.u32 2, %s48
        %p813 = scmp.lt.s32.totalorder %s812, 3
        %s814 = scalar_select %p813, %s812, 3
        %s815 = smul.addr %s814, 8
        %s816 = scalar_lea.vmem %s1, %s815
        %p817 = pneg %p95
        %p818 = pneg %p92
        %s819 = smul.u32 2, %s48
        %p820 = scmp.lt.s32.totalorder %s819, 3
        %s821 = scalar_select %p820, %s819, 3
        %s822 = scalar_lea.vmem %s2, %s821
        %p823 = pneg %p121
        %p824 = pneg %p118
        %s825 = smul.u32 2, %s48
        %p826 = scmp.lt.s32.totalorder %s825, 3
        %s827 = scalar_select %p826, %s825, 3
        %s828 = scalar_lea.vmem %s3, %s827
        %p829 = pneg %p147
        %p830 = pneg %p144
        %p831 = pneg %p168
        %p832 = pneg %p165
        %p833 = pneg %p189
        %p834 = pneg %p186
        %p835 = pneg %p210
        %p836 = pneg %p207
        %p837 = pneg %p231
        %p838 = pneg %p228
        %p839 = pneg %p252
        %p840 = pneg %p249
        %p841 = pneg %p273
        %p842 = pneg %p270
        %p843 = pneg %p294
        %p844 = pneg %p291
        %p845 = pneg %p315
        %p846 = pneg %p312
        %p847 = pneg %p336
        %p848 = pneg %p333
        %p849 = pneg %p357
        %p850 = pneg %p354
        %p851 = pneg %p378
        %p852 = pneg %p375
        %p853 = pneg %p399
        %p854 = pneg %p396
        %p855 = pneg %p420
        %p856 = pneg %p417
        %p857 = pneg %p441
        %p858 = pneg %p438
        %p859 = pneg %p462
        %p860 = pneg %p459
        %p861 = pneg %p483
        %p862 = pneg %p480
        %p863 = pneg %p504
        %p864 = pneg %p501
        %p865 = pneg %p525
        %p866 = pneg %p522
        %p867 = pneg %p546
        %p868 = pneg %p543
        %p869 = pneg %p572
        %p870 = pneg %p569
        %s871 = sand.u32 %s559, 1
        %s872 = scalar_lea.sflag [#allocation5], %s871
        %s873 = sand.u32 %s559, 1
        %s874 = smul.addr %s873, 16
        %s875 = scalar_lea.vmem [#allocation11], %s874
        %p876 = pneg %p598
        %p877 = pneg %p595
        %s878 = smul.u32 2, %s48
        %p879 = scmp.lt.s32.totalorder %s878, 3
        %s880 = scalar_select %p879, %s878, 3
        %s881 = smul.addr %s880, 8
        %s882 = scalar_lea.vmem %s24, %s881
        %p883 = pneg %p624
        %p884 = pneg %p621
        %s885 = sand.u32 %s611, 1
        %s886 = scalar_lea.sflag [#allocation13], %s885
        %s887 = sand.u32 %s611, 1
        %s888 = smul.addr %s887, 16
        %s889 = scalar_lea.vmem [#allocation12], %s888
        %s890 = smul.u32 2, %s48
        %p891 = scmp.lt.s32.totalorder %s890, 3
        %s892 = scalar_select %p891, %s890, 3
        %s893 = smul.addr %s892, 8
        %s894 = scalar_lea.vmem %s0, %s893
        %s895 = smul.u32 2, %s48
        %s896 = smul.u32 2, %s48
        %p897 = scmp.lt.s32.totalorder %s896, 3
        %s898 = scalar_select %p897, %s896, 3
        %s899 = smul.addr %s898, 8
        %s900 = scalar_lea.vmem %s1, %s899
        %s901 = smul.u32 2, %s48
        %s902 = smul.u32 2, %s48
        %p903 = scmp.lt.s32.totalorder %s902, 3
        %s904 = scalar_select %p903, %s902, 3
        %s905 = scalar_lea.vmem %s2, %s904
        %s906 = smul.u32 2, %s48
        %s907 = smul.u32 2, %s48
        %p908 = scmp.lt.s32.totalorder %s907, 3
        %s909 = scalar_select %p908, %s907, 3
        %s910 = scalar_lea.vmem %s3, %s909
        %s911 = smul.u32 2, %s48
        %s912 = smul.u32 2, %s48
        %s913 = smul.u32 2, %s48
        %p914 = scmp.lt.s32.totalorder %s913, 3
        %s915 = scalar_select %p914, %s913, 3
        %s916 = smul.addr %s915, 8
        %s917 = scalar_lea.vmem %s24, %s916
        %s918 = smul.u32 2, %s48
        %s919 = smul.u32 2, %s48
        %v920 = vld [vmem:[%s894] sm:$0xff]
        %v921 = vld [vmem:[%s894 + $0x8] sm:$0xff]
        %v922 = vld [vmem:[%s900] sm:$0xff]
        %v923 = vld [vmem:[%s900 + $0x8] sm:$0xff]
        %v924 = vld [vmem:[%s4] sm:$0xff]
        %v925 = vld [vmem:[%s4 + $0x8] sm:$0xff]
        %v926 = vld [vmem:[%s4 + $0x10] sm:$0xff]
        %v927 = vld [vmem:[%s4 + $0x18] sm:$0xff]
        %v928 = vld [vmem:[%s7] sm:$0x1]
        %v930 = vperm.slane %v928, 0
        %vm932 = vcmask 261120
        %v934 = vsel %vm932, %v920, 0
        %v937 = vsel %vm932, %v921, 0
        %939 = vmatpush.msra.mxu0 0.0
        %940 = vmatpush.msra.mxu0 0.0
        %941 = vmatpush.msra.mxu0 0.0
        %942 = vmatpush.msra.mxu0 0.0
        %943 = vmatpush.msra.mxu0 0.0
        %944 = vmatpush.msra.mxu0 0.0
        %945 = vmatpush.msra.mxu0 0.0
        %946 = vmatpush.msra.mxu0 0.0
        %947 = vmatpush.msra.mxu0 0.0
        %948 = vmatpush.msra.mxu0 0.0
        %949 = vmatpush.msra.mxu0 0.0
        %950 = vmatpush.msra.mxu0 0.0
        %951 = vmatpush.msra.mxu0 %v927
        %952 = vmatpush.msra.mxu0 %v926
        %953 = vmatpush.msra.mxu0 %v925
        %954 = vmatpush.msra.mxu0 %v924
        %955 = vmatmul.f32.gmra.mxu0 %v934
        %v956 = vpop.f32.mrf.mxu0
        %v957 = vadd.f32 %v930, %v956
        %958 = vmatmul.f32.gmra.mxu0 %v937
        %v959 = vpop.f32.mrf.mxu0
        %v960 = vadd.f32 %v930, %v959
        %961 = vdwg.mxu0
        %v962 = vld [vmem:[#allocation3] sm:$0xff]
        %v963 = vld [vmem:[#allocation3 + $0x8] sm:$0xff]
        %v964 = vld [vmem:[#allocation3 + $0x10] sm:$0xff]
        %v965 = vld [vmem:[#allocation3 + $0x18] sm:$0xff]
        %v966 = vld [vmem:[%s8] sm:$0x1]
        %v968 = vperm.slane %v966, 0
        %v971 = vsel %vm932, %v922, 0
        %v974 = vsel %vm932, %v923, 0
        %976 = vmatpush.msra.mxu0 0.0
        %977 = vmatpush.msra.mxu0 0.0
        %978 = vmatpush.msra.mxu0 0.0
        %979 = vmatpush.msra.mxu0 0.0
        %980 = vmatpush.msra.mxu0 0.0
        %981 = vmatpush.msra.mxu0 0.0
        %982 = vmatpush.msra.mxu0 0.0
        %983 = vmatpush.msra.mxu0 0.0
        %984 = vmatpush.msra.mxu0 0.0
        %985 = vmatpush.msra.mxu0 0.0
        %986 = vmatpush.msra.mxu0 0.0
        %987 = vmatpush.msra.mxu0 0.0
        %988 = vmatpush.msra.mxu0 %v965
        %989 = vmatpush.msra.mxu0 %v964
        %990 = vmatpush.msra.mxu0 %v963
        %991 = vmatpush.msra.mxu0 %v962
        %992 = vmatmul.f32.gmra.mxu0 %v971
        %v993 = vpop.f32.mrf.mxu0
        %v994 = vadd.f32 %v968, %v993
        %995 = vmatmul.f32.gmra.mxu0 %v974
        %v996 = vpop.f32.mrf.mxu0
        %v997 = vadd.f32 %v968, %v996
        %998 = vdwg.mxu0
        %v999 = vld [vmem:[#allocation6] sm:$0xff]
        %v1000 = vld [vmem:[#allocation6 + $0x8] sm:$0xff]
        %v1001 = vld [vmem:[#allocation6 + $0x10] sm:$0xff]
        %v1002 = vld [vmem:[#allocation6 + $0x18] sm:$0xff]
        %v1003 = vld [vmem:[%s9] sm:$0x1]
        %v1005 = vperm.slane %v1003, 0
        %1007 = vmatpush.msra.mxu0 0.0
        %1008 = vmatpush.msra.mxu0 0.0
        %1009 = vmatpush.msra.mxu0 0.0
        %1010 = vmatpush.msra.mxu0 0.0
        %1011 = vmatpush.msra.mxu0 0.0
        %1012 = vmatpush.msra.mxu0 0.0
        %1013 = vmatpush.msra.mxu0 0.0
        %1014 = vmatpush.msra.mxu0 0.0
        %1015 = vmatpush.msra.mxu0 0.0
        %1016 = vmatpush.msra.mxu0 0.0
        %1017 = vmatpush.msra.mxu0 0.0
        %1018 = vmatpush.msra.mxu0 0.0
        %1019 = vmatpush.msra.mxu0 %v1002
        %1020 = vmatpush.msra.mxu0 %v1001
        %1021 = vmatpush.msra.mxu0 %v1000
        %1022 = vmatpush.msra.mxu0 %v999
        %1023 = vmatmul.f32.gmra.mxu0 %v971
        %v1024 = vpop.f32.mrf.mxu0
        %v1025 = vadd.f32 %v1005, %v1024
        %1026 = vmatmul.f32.gmra.mxu0 %v974
        %v1027 = vpop.f32.mrf.mxu0
        %v1028 = vadd.f32 %v1005, %v1027
        %1029 = vdwg.mxu0
        %v1030 = vld [vmem:[%s910] sm:$0x1]
        %v1031 = vld [vmem:[%s910 + $0x1] sm:$0x1]
        %v1034 = vperm.slane %v1030, 0
        %v1035 = vperm.slane %v1031, 0
        %1036 = vset.pattern.permute.xlu0 0
        %1037 = vperm.xlu0 %1036, %v1034
        %v1038 = vpop.permute.xlu0 %1037
        %1040 = vset.pattern.permute.xlu0 0
        %1041 = vperm.xlu0 %1040, %v1035
        %v1042 = vpop.permute.xlu0 %1041
        %v1045 = vsel %vm932, %v957, 0
        %v1048 = vsel %vm932, %v994, 0
        %1050 = vmatpush.xpose.msra.mxu0 0.0
        %1051 = vmatpush.xpose.msra.mxu0 0.0
        %1052 = vmatpush.xpose.msra.mxu0 0.0
        %1053 = vmatpush.xpose.msra.mxu0 0.0
        %1054 = vmatpush.xpose.msra.mxu0 0.0
        %1055 = vmatpush.xpose.msra.mxu0 0.0
        %1056 = vmatpush.xpose.msra.mxu0 0.0
        %1057 = vmatpush.xpose.msra.mxu0 0.0
        %1058 = vmatpush.xpose.msra.mxu0 0.0
        %1059 = vmatpush.xpose.msra.mxu0 0.0
        %1060 = vmatpush.xpose.msra.mxu0 0.0
        %1061 = vmatpush.xpose.msra.mxu0 0.0
        %1062 = vmatpush.xpose.msra.mxu0 0.0
        %1063 = vmatpush.xpose.msra.mxu0 0.0
        %1064 = vmatpush.xpose.msra.mxu0 0.0
        %1065 = vmatpush.xpose.msra.mxu0 %v1048
        %1066 = vmatmul.f32.gmra.mxu0 %v1045
        %v1067 = vpop.f32.mrf.mxu0
        %v1068 = vadd.f32 %v1038, %v1067
        %1069 = vdwg.mxu0
        %v1071 = vsel %vm932, %v960, 0
        %v1074 = vsel %vm932, %v997, 0
        %1076 = vmatpush.xpose.msra.mxu0 0.0
        %1077 = vmatpush.xpose.msra.mxu0 0.0
        %1078 = vmatpush.xpose.msra.mxu0 0.0
        %1079 = vmatpush.xpose.msra.mxu0 0.0
        %1080 = vmatpush.xpose.msra.mxu0 0.0
        %1081 = vmatpush.xpose.msra.mxu0 0.0
        %1082 = vmatpush.xpose.msra.mxu0 0.0
        %1083 = vmatpush.xpose.msra.mxu0 0.0
        %1084 = vmatpush.xpose.msra.mxu0 0.0
        %1085 = vmatpush.xpose.msra.mxu0 0.0
        %1086 = vmatpush.xpose.msra.mxu0 0.0
        %1087 = vmatpush.xpose.msra.mxu0 0.0
        %1088 = vmatpush.xpose.msra.mxu0 0.0
        %1089 = vmatpush.xpose.msra.mxu0 0.0
        %1090 = vmatpush.xpose.msra.mxu0 0.0
        %1091 = vmatpush.xpose.msra.mxu0 %v1074
        %1092 = vmatmul.f32.gmra.mxu0 %v1071
        %v1093 = vpop.f32.mrf.mxu0
        %v1094 = vadd.f32 %v1042, %v1093
        %1095 = vdwg.mxu0
        %v1096 = vld [vmem:[%s905] sm:$0x1]
        %v1097 = vld [vmem:[%s905 + $0x1] sm:$0x1]
        %vm1098 = vcmp.gt.f32.partialorder %v1096, 0.5
        %vm1099 = vcmp.gt.f32.partialorder %v1097, 0.5
        %v1100 = vsel %vm1098, 1, 0
        %v1101 = vsel %vm1099, 1, 0
        %v1102 = vperm.slane %v1100, 0
        %v1103 = vperm.slane %v1101, 0
        %vm1104 = vcmp.eq.s32.totalorder %v1102, 1
        %vm1105 = vcmp.eq.s32.totalorder %v1103, 1
        %v1106 = vsel %vm1104, %v1068, -1e+30
        %v1107 = vsel %vm1105, %v1094, -1e+30
        %vm1108 = vcmask 64512
        %v1109 = vsel %vm1108, %v1106, -inf
        %1110 = vmax.xlane.f32.xlu0 %v1109
        %v1111 = vpop.xlane.xlu0 %1110
        %v1112 = vsel %vm1108, %v1107, -inf
        %1113 = vmax.xlane.f32.xlu0 %v1112
        %v1114 = vpop.xlane.xlu0 %1113
        %v1115 = vsub.f32 %v1106, %v1111
        %v1116 = vsub.f32 %v1107, %v1114
        %v1117 = vmul.f32 %v1115, 1.442695
        %v1118 = vpow.pop %v1117
        %v1119 = vmul.f32 %v1116, 1.442695
        %v1120 = vpow.pop %v1119
        %v1121 = vsel %vm1108, %v1118, 0.0
        %1122 = vadd.xlane.f32.xlu0 %v1121
        %v1123 = vpop.xlane.xlu0 %1122
        %v1124 = vsel %vm1108, %v1120, 0.0
        %1125 = vadd.xlane.f32.xlu0 %v1124
        %v1126 = vpop.xlane.xlu0 %1125
        %v1127 = vrcp.pop %v1123
        %v1128 = vmul.f32 %v1123, %v1127
        %v1129 = vsub.f32 1.0, %v1128
        %v1130 = vmul.f32 %v1127, %v1129
        %v1131 = vadd.f32 %v1127, %v1130
        %vm1132 = vweird.f32 %v1123
        %vm1133 = vweird.f32 %v1127
        %vm1134 = vmor %vm1132, %vm1133
        %v1135 = vsel %vm1134, %v1127, %v1131
        %v1136 = vand.u32 2147483647, %v1123
        %vm1137 = vcmp.eq.f32.partialorder %v1136, 8.507059e+37
        %v1138 = vand.u32 %v1123, 2147483648
        %v1139 = vor.u32 1.1754944e-38, %v1138
        %v1140 = vsel %vm1137, %v1139, %v1135
        %v1141 = vmul.f32 %v1118, %v1140
        %v1142 = vrcp.pop %v1126
        %v1143 = vmul.f32 %v1126, %v1142
        %v1144 = vsub.f32 1.0, %v1143
        %v1145 = vmul.f32 %v1142, %v1144
        %v1146 = vadd.f32 %v1142, %v1145
        %vm1147 = vweird.f32 %v1126
        %vm1148 = vweird.f32 %v1142
        %vm1149 = vmor %vm1147, %vm1148
        %v1150 = vsel %vm1149, %v1142, %v1146
        %v1151 = vand.u32 2147483647, %v1126
        %vm1152 = vcmp.eq.f32.partialorder %v1151, 8.507059e+37
        %v1153 = vand.u32 %v1126, 2147483648
        %v1154 = vor.u32 1.1754944e-38, %v1153
        %v1155 = vsel %vm1152, %v1154, %v1150
        %v1156 = vmul.f32 %v1120, %v1155
        %v1158 = vsel %vm1108, %v1141, 0
        %1160 = vmatpush.msra.mxu0 0.0
        %1161 = vmatpush.msra.mxu0 0.0
        %1162 = vmatpush.msra.mxu0 0.0
        %1163 = vmatpush.msra.mxu0 0.0
        %1164 = vmatpush.msra.mxu0 0.0
        %1165 = vmatpush.msra.mxu0 0.0
        %1166 = vmatpush.msra.mxu0 0.0
        %1167 = vmatpush.msra.mxu0 0.0
        %1168 = vmatpush.msra.mxu0 0.0
        %1169 = vmatpush.msra.mxu0 0.0
        %1170 = vmatpush.msra.mxu0 0.0
        %1171 = vmatpush.msra.mxu0 0.0
        %1172 = vmatpush.msra.mxu0 0.0
        %1173 = vmatpush.msra.mxu0 0.0
        %1174 = vmatpush.msra.mxu0 0.0
        %1175 = vmatpush.msra.mxu0 %v1025
        %1176 = vmatmul.f32.gmra.mxu0 %v1158
        %v1177 = vpop.f32.mrf.mxu0
        %v1178 = vadd.f32 0.0, %v1177
        %1179 = vdwg.mxu0
        %v1181 = vsel %vm1108, %v1156, 0
        %1183 = vmatpush.msra.mxu0 0.0
        %1184 = vmatpush.msra.mxu0 0.0
        %1185 = vmatpush.msra.mxu0 0.0
        %1186 = vmatpush.msra.mxu0 0.0
        %1187 = vmatpush.msra.mxu0 0.0
        %1188 = vmatpush.msra.mxu0 0.0
        %1189 = vmatpush.msra.mxu0 0.0
        %1190 = vmatpush.msra.mxu0 0.0
        %1191 = vmatpush.msra.mxu0 0.0
        %1192 = vmatpush.msra.mxu0 0.0
        %1193 = vmatpush.msra.mxu0 0.0
        %1194 = vmatpush.msra.mxu0 0.0
        %1195 = vmatpush.msra.mxu0 0.0
        %1196 = vmatpush.msra.mxu0 0.0
        %1197 = vmatpush.msra.mxu0 0.0
        %1198 = vmatpush.msra.mxu0 %v1028
        %1199 = vmatmul.f32.gmra.mxu0 %v1181
        %v1200 = vpop.f32.mrf.mxu0
        %v1201 = vadd.f32 0.0, %v1200
        %1202 = vdwg.mxu0
        %v1203 = vld [vmem:[#allocation8] sm:$0xff]
        %v1204 = vld [vmem:[#allocation8 + $0x8] sm:$0xff]
        %v1205 = vld [vmem:[#allocation8 + $0x10] sm:$0xff]
        %v1206 = vld [vmem:[#allocation8 + $0x18] sm:$0xff]
        %v1207 = vld [vmem:[%s11] sm:$0x1]
        %v1209 = vperm.slane %v1207, 0
        %v1212 = vsel %vm932, %v1178, 0
        %v1215 = vsel %vm932, %v1201, 0
        %1217 = vmatpush.msra.mxu0 0.0
        %1218 = vmatpush.msra.mxu0 0.0
        %1219 = vmatpush.msra.mxu0 0.0
        %1220 = vmatpush.msra.mxu0 0.0
        %1221 = vmatpush.msra.mxu0 0.0
        %1222 = vmatpush.msra.mxu0 0.0
        %1223 = vmatpush.msra.mxu0 0.0
        %1224 = vmatpush.msra.mxu0 0.0
        %1225 = vmatpush.msra.mxu0 0.0
        %1226 = vmatpush.msra.mxu0 0.0
        %1227 = vmatpush.msra.mxu0 0.0
        %1228 = vmatpush.msra.mxu0 0.0
        %1229 = vmatpush.msra.mxu0 %v1206
        %1230 = vmatpush.msra.mxu0 %v1205
        %1231 = vmatpush.msra.mxu0 %v1204
        %1232 = vmatpush.msra.mxu0 %v1203
        %1233 = vmatmul.f32.gmra.mxu0 %v1212
        %v1234 = vpop.f32.mrf.mxu0
        %v1235 = vadd.f32 %v1209, %v1234
        %1236 = vmatmul.f32.gmra.mxu0 %v1215
        %v1237 = vpop.f32.mrf.mxu0
        %v1238 = vadd.f32 %v1209, %v1237
        %1239 = vdwg.mxu0
        %v1240 = vld [vmem:[%s12] sm:$0x1]
        %v1241 = vld [vmem:[%s13] sm:$0x1]
        %v1242 = vsel %vm932, %v1235, 0.0
        %1243 = vadd.xlane.f32.xlu0 %v1242
        %v1244 = vpop.xlane.xlu0 %1243
        %v1245 = vsel %vm932, %v1238, 0.0
        %1246 = vadd.xlane.f32.xlu0 %v1245
        %v1247 = vpop.xlane.xlu0 %1246
        %v1248 = vrcp.pop 32.0
        %v1249 = vmul.f32 32.0, %v1248
        %v1250 = vsub.f32 1.0, %v1249
        %v1251 = vmul.f32 %v1248, %v1250
        %v1252 = vadd.f32 %v1248, %v1251
        %vm1253 = vweird.f32 %v1248
        %v1254 = vsel %vm1253, %v1248, %v1252
        %v1255 = vmul.f32 %v1244, %v1254
        %v1256 = vmul.f32 %v1247, %v1254
        %v1257 = vsub.f32 %v1235, %v1255
        %v1258 = vsub.f32 %v1238, %v1256
        %v1259 = vmul.f32 %v1257, %v1257
        %v1260 = vmul.f32 %v1258, %v1258
        %v1261 = vsel %vm932, %v1259, 0.0
        %1262 = vadd.xlane.f32.xlu0 %v1261
        %v1263 = vpop.xlane.xlu0 %1262
        %v1264 = vsel %vm932, %v1260, 0.0
        %1265 = vadd.xlane.f32.xlu0 %v1264
        %v1266 = vpop.xlane.xlu0 %1265
        %v1267 = vmul.f32 %v1263, %v1254
        %v1268 = vmul.f32 %v1266, %v1254
        %v1269 = vadd.f32 %v1267, 1e-05
        %v1270 = vadd.f32 %v1268, 1e-05
        %v1271 = vrsqrt.pop %v1269
        %v1272 = vmul.f32 %v1271, %v1269
        %v1273 = vmul.f32 %v1272, %v1271
        %v1274 = vmul.f32 0.5, %v1273
        %v1275 = vsub.f32 1.5, %v1274
        %v1276 = vmul.f32 %v1271, %v1275
        %vm1277 = vweird.f32 %v1269
        %vm1278 = vweird.f32 %v1271
        %vm1279 = vmor %vm1277, %vm1278
        %v1280 = vsel %vm1279, %v1271, %v1276
        %v1281 = vrsqrt.pop %v1270
        %v1282 = vmul.f32 %v1281, %v1270
        %v1283 = vmul.f32 %v1282, %v1281
        %v1284 = vmul.f32 0.5, %v1283
        %v1285 = vsub.f32 1.5, %v1284
        %v1286 = vmul.f32 %v1281, %v1285
        %vm1287 = vweird.f32 %v1270
        %vm1288 = vweird.f32 %v1281
        %vm1289 = vmor %vm1287, %vm1288
        %v1290 = vsel %vm1289, %v1281, %v1286
        %v1291 = vmul.f32 %v1257, %v1280
        %v1292 = vmul.f32 %v1258, %v1290
        %v1294 = vperm.slane %v1240, 0
        %v1296 = vmul.f32 %v1291, %v1294
        %v1297 = vmul.f32 %v1292, %v1294
        %v1299 = vperm.slane %v1241, 0
        %v1301 = vadd.f32 %v1296, %v1299
        %v1302 = vadd.f32 %v1297, %v1299
        %v1303 = vld [vmem:[%s14] sm:$0x1]
        %v1305 = vperm.slane %v1303, 0
        %v1307 = vmul.f32 %v920, %v1305
        %v1308 = vmul.f32 %v921, %v1305
        %v1309 = vsel %vm932, %v1307, 0.0
        %1310 = vadd.xlane.f32.xlu0 %v1309
        %v1311 = vpop.xlane.xlu0 %1310
        %v1312 = vsel %vm932, %v1308, 0.0
        %1313 = vadd.xlane.f32.xlu0 %v1312
        %v1314 = vpop.xlane.xlu0 %1313
        %v1315 = vld [vmem:[%s15] sm:$0x1]
        %v1317 = vperm.slane %v1315, 0
        %v1319 = vmul.f32 %v1301, %v1317
        %v1320 = vmul.f32 %v1302, %v1317
        %v1321 = vsel %vm932, %v1319, 0.0
        %1322 = vadd.xlane.f32.xlu0 %v1321
        %v1323 = vpop.xlane.xlu0 %1322
        %v1324 = vsel %vm932, %v1320, 0.0
        %1325 = vadd.xlane.f32.xlu0 %v1324
        %v1326 = vpop.xlane.xlu0 %1325
        %v1327 = vadd.f32 %v1311, %v1323
        %v1328 = vadd.f32 %v1314, %v1326
        %v1329 = vld [vmem:[#allocation2] sm:$0x1]
        %v1331 = vperm.slane %v1329, 0
        %v1333 = vadd.f32 %v1327, %v1331
        %v1334 = vadd.f32 %v1328, %v1331
        %v1335 = vsub.f32 0.0, %v1333
        %v1336 = vsub.f32 0.0, %v1334
        %v1337 = vmul.f32 %v1335, 1.442695
        %v1338 = vpow.pop %v1337
        %v1339 = vmul.f32 %v1336, 1.442695
        %v1340 = vpow.pop %v1339
        %v1341 = vadd.f32 %v1338, 1.0
        %v1342 = vadd.f32 %v1340, 1.0
        %v1343 = vrcp.pop %v1341
        %v1344 = vmul.f32 %v1341, %v1343
        %v1345 = vsub.f32 1.0, %v1344
        %v1346 = vmul.f32 %v1343, %v1345
        %v1347 = vadd.f32 %v1343, %v1346
        %vm1348 = vweird.f32 %v1341
        %vm1349 = vweird.f32 %v1343
        %vm1350 = vmor %vm1348, %vm1349
        %v1351 = vsel %vm1350, %v1343, %v1347
        %v1352 = vand.u32 2147483647, %v1341
        %vm1353 = vcmp.eq.f32.partialorder %v1352, 8.507059e+37
        %v1354 = vand.u32 %v1341, 2147483648
        %v1355 = vor.u32 1.1754944e-38, %v1354
        %v1356 = vsel %vm1353, %v1355, %v1351
        %v1357 = vmul.f32 1.0, %v1356
        %v1358 = vrcp.pop %v1342
        %v1359 = vmul.f32 %v1342, %v1358
        %v1360 = vsub.f32 1.0, %v1359
        %v1361 = vmul.f32 %v1358, %v1360
        %v1362 = vadd.f32 %v1358, %v1361
        %vm1363 = vweird.f32 %v1342
        %vm1364 = vweird.f32 %v1358
        %vm1365 = vmor %vm1363, %vm1364
        %v1366 = vsel %vm1365, %v1358, %v1362
        %v1367 = vand.u32 2147483647, %v1342
        %vm1368 = vcmp.eq.f32.partialorder %v1367, 8.507059e+37
        %v1369 = vand.u32 %v1342, 2147483648
        %v1370 = vor.u32 1.1754944e-38, %v1369
        %v1371 = vsel %vm1368, %v1370, %v1366
        %v1372 = vmul.f32 1.0, %v1371
        %v1373 = vsub.f32 1.0, %v1357
        %v1374 = vsub.f32 1.0, %v1372
        %v1375 = vadd.f32 %v920, %v1235
        %v1376 = vadd.f32 %v921, %v1238
        %v1377 = vsel %vm932, %v1375, 0.0
        %1378 = vadd.xlane.f32.xlu0 %v1377
        %v1379 = vpop.xlane.xlu0 %1378
        %v1380 = vsel %vm932, %v1376, 0.0
        %1381 = vadd.xlane.f32.xlu0 %v1380
        %v1382 = vpop.xlane.xlu0 %1381
        %v1383 = vmul.f32 %v1379, %v1254
        %v1384 = vmul.f32 %v1382, %v1254
        %v1385 = vsub.f32 %v1375, %v1383
        %v1386 = vsub.f32 %v1376, %v1384
        %v1387 = vmul.f32 %v1385, %v1385
        %v1388 = vmul.f32 %v1386, %v1386
        %v1389 = vsel %vm932, %v1387, 0.0
        %1390 = vadd.xlane.f32.xlu0 %v1389
        %v1391 = vpop.xlane.xlu0 %1390
        %v1392 = vsel %vm932, %v1388, 0.0
        %1393 = vadd.xlane.f32.xlu0 %v1392
        %v1394 = vpop.xlane.xlu0 %1393
        %v1395 = vmul.f32 %v1391, %v1254
        %v1396 = vmul.f32 %v1394, %v1254
        %v1397 = vadd.f32 %v1395, 1e-05
        %v1398 = vadd.f32 %v1396, 1e-05
        %v1399 = vrsqrt.pop %v1397
        %v1400 = vmul.f32 %v1399, %v1397
        %v1401 = vmul.f32 %v1400, %v1399
        %v1402 = vmul.f32 0.5, %v1401
        %v1403 = vsub.f32 1.5, %v1402
        %v1404 = vmul.f32 %v1399, %v1403
        %vm1405 = vweird.f32 %v1397
        %vm1406 = vweird.f32 %v1399
        %vm1407 = vmor %vm1405, %vm1406
        %v1408 = vsel %vm1407, %v1399, %v1404
        %v1409 = vrsqrt.pop %v1398
        %v1410 = vmul.f32 %v1409, %v1398
        %v1411 = vmul.f32 %v1410, %v1409
        %v1412 = vmul.f32 0.5, %v1411
        %v1413 = vsub.f32 1.5, %v1412
        %v1414 = vmul.f32 %v1409, %v1413
        %vm1415 = vweird.f32 %v1398
        %vm1416 = vweird.f32 %v1409
        %vm1417 = vmor %vm1415, %vm1416
        %v1418 = vsel %vm1417, %v1409, %v1414
        %v1419 = vmul.f32 %v1385, %v1408
        %v1420 = vmul.f32 %v1386, %v1418
        %v1421 = vmul.f32 %v1419, %v1294
        %v1422 = vmul.f32 %v1420, %v1294
        %v1423 = vadd.f32 %v1421, %v1299
        %v1424 = vadd.f32 %v1422, %v1299
        %v1425 = vld [vmem:[#allocation9] sm:$0xff]
        %v1426 = vld [vmem:[#allocation9 + $0x8] sm:$0xff]
        %v1427 = vld [vmem:[#allocation9 + $0x10] sm:$0xff]
        %v1428 = vld [vmem:[#allocation9 + $0x18] sm:$0xff]
        %v1429 = vld [vmem:[%s18] sm:$0x1]
        %v1431 = vperm.slane %v1429, 0
        %v1434 = vsel %vm932, %v1423, 0
        %v1437 = vsel %vm932, %v1424, 0
        %1439 = vmatpush.msra.mxu0 0.0
        %1440 = vmatpush.msra.mxu0 0.0
        %1441 = vmatpush.msra.mxu0 0.0
        %1442 = vmatpush.msra.mxu0 0.0
        %1443 = vmatpush.msra.mxu0 0.0
        %1444 = vmatpush.msra.mxu0 0.0
        %1445 = vmatpush.msra.mxu0 0.0
        %1446 = vmatpush.msra.mxu0 0.0
        %1447 = vmatpush.msra.mxu0 0.0
        %1448 = vmatpush.msra.mxu0 0.0
        %1449 = vmatpush.msra.mxu0 0.0
        %1450 = vmatpush.msra.mxu0 0.0
        %1451 = vmatpush.msra.mxu0 %v1428
        %1452 = vmatpush.msra.mxu0 %v1427
        %1453 = vmatpush.msra.mxu0 %v1426
        %1454 = vmatpush.msra.mxu0 %v1425
        %1455 = vmatmul.f32.gmra.mxu0 %v1434
        %v1456 = vpop.f32.mrf.mxu0
        %v1457 = vadd.f32 %v1431, %v1456
        %1458 = vmatmul.f32.gmra.mxu0 %v1437
        %v1459 = vpop.f32.mrf.mxu0
        %v1460 = vadd.f32 %v1431, %v1459
        %1461 = vdwg.mxu0
        %v1462 = vmax.f32 %v1457, 0.0
        %v1463 = vmax.f32 %v1460, 0.0
        %v1464 = vld [vmem:[%s19] sm:$0xff]
        %v1465 = vld [vmem:[%s19 + $0x8] sm:$0xff]
        %v1466 = vld [vmem:[%s19 + $0x10] sm:$0xff]
        %v1467 = vld [vmem:[%s19 + $0x18] sm:$0xff]
        %v1468 = vld [vmem:[%s19 + $0x20] sm:$0xff]
        %v1469 = vld [vmem:[%s19 + $0x28] sm:$0xff]
        %v1470 = vld [vmem:[%s19 + $0x30] sm:$0xff]
        %v1471 = vld [vmem:[%s19 + $0x38] sm:$0xff]
        %v1472 = vld [vmem:[%s20] sm:$0x1]
        %v1474 = vperm.slane %v1472, 0
        %vm1476 = vcmask 523264
        %v1478 = vsel %vm1476, %v1462, 0
        %v1481 = vsel %vm1476, %v1463, 0
        %1483 = vmatpush.msra.mxu0 0.0
        %1484 = vmatpush.msra.mxu0 0.0
        %1485 = vmatpush.msra.mxu0 0.0
        %1486 = vmatpush.msra.mxu0 0.0
        %1487 = vmatpush.msra.mxu0 0.0
        %1488 = vmatpush.msra.mxu0 0.0
        %1489 = vmatpush.msra.mxu0 0.0
        %1490 = vmatpush.msra.mxu0 0.0
        %1491 = vmatpush.msra.mxu0 %v1471
        %1492 = vmatpush.msra.mxu0 %v1470
        %1493 = vmatpush.msra.mxu0 %v1469
        %1494 = vmatpush.msra.mxu0 %v1468
        %1495 = vmatpush.msra.mxu0 %v1467
        %1496 = vmatpush.msra.mxu0 %v1466
        %1497 = vmatpush.msra.mxu0 %v1465
        %1498 = vmatpush.msra.mxu0 %v1464
        %1499 = vmatmul.f32.gmra.mxu0 %v1478
        %v1500 = vpop.f32.mrf.mxu0
        %v1501 = vadd.f32 %v1474, %v1500
        %1502 = vmatmul.f32.gmra.mxu0 %v1481
        %v1503 = vpop.f32.mrf.mxu0
        %v1504 = vadd.f32 %v1474, %v1503
        %1505 = vdwg.mxu0
        %v1506 = vld [vmem:[%s21] sm:$0x1]
        %v1507 = vld [vmem:[%s22] sm:$0x1]
        %v1508 = vsel %vm932, %v1501, 0.0
        %1509 = vadd.xlane.f32.xlu0 %v1508
        %v1510 = vpop.xlane.xlu0 %1509
        %v1511 = vsel %vm932, %v1504, 0.0
        %1512 = vadd.xlane.f32.xlu0 %v1511
        %v1513 = vpop.xlane.xlu0 %1512
        %v1514 = vmul.f32 %v1510, %v1254
        %v1515 = vmul.f32 %v1513, %v1254
        %v1516 = vsub.f32 %v1501, %v1514
        %v1517 = vsub.f32 %v1504, %v1515
        %v1518 = vmul.f32 %v1516, %v1516
        %v1519 = vmul.f32 %v1517, %v1517
        %v1520 = vsel %vm932, %v1518, 0.0
        %1521 = vadd.xlane.f32.xlu0 %v1520
        %v1522 = vpop.xlane.xlu0 %1521
        %v1523 = vsel %vm932, %v1519, 0.0
        %1524 = vadd.xlane.f32.xlu0 %v1523
        %v1525 = vpop.xlane.xlu0 %1524
        %v1526 = vmul.f32 %v1522, %v1254
        %v1527 = vmul.f32 %v1525, %v1254
        %v1528 = vadd.f32 %v1526, 1e-05
        %v1529 = vadd.f32 %v1527, 1e-05
        %v1530 = vrsqrt.pop %v1528
        %v1531 = vmul.f32 %v1530, %v1528
        %v1532 = vmul.f32 %v1531, %v1530
        %v1533 = vmul.f32 0.5, %v1532
        %v1534 = vsub.f32 1.5, %v1533
        %v1535 = vmul.f32 %v1530, %v1534
        %vm1536 = vweird.f32 %v1528
        %vm1537 = vweird.f32 %v1530
        %vm1538 = vmor %vm1536, %vm1537
        %v1539 = vsel %vm1538, %v1530, %v1535
        %v1540 = vrsqrt.pop %v1529
        %v1541 = vmul.f32 %v1540, %v1529
        %v1542 = vmul.f32 %v1541, %v1540
        %v1543 = vmul.f32 0.5, %v1542
        %v1544 = vsub.f32 1.5, %v1543
        %v1545 = vmul.f32 %v1540, %v1544
        %vm1546 = vweird.f32 %v1529
        %vm1547 = vweird.f32 %v1540
        %vm1548 = vmor %vm1546, %vm1547
        %v1549 = vsel %vm1548, %v1540, %v1545
        %v1550 = vmul.f32 %v1516, %v1539
        %v1551 = vmul.f32 %v1517, %v1549
        %v1553 = vperm.slane %v1506, 0
        %v1555 = vmul.f32 %v1550, %v1553
        %v1556 = vmul.f32 %v1551, %v1553
        %v1558 = vperm.slane %v1507, 0
        %v1560 = vadd.f32 %v1555, %v1558
        %v1561 = vadd.f32 %v1556, %v1558
        %1562 = vst.msk [vmem:[%s875] sm:$0xff] %vm932, %v1560
        %1563 = vst.msk [vmem:[%s875 + $0x8] sm:$0xff] %vm932, %v1561
        %vm1564 = vcmask 7168
        %1565 = vst.msk [vmem:[%s917] sm:$0xff] %vm1564, %v1357
        %1566 = vst.msk [vmem:[%s917 + $0x8] sm:$0xff] %vm1564, %v1372
        %1568 = vset.pattern.permute.xlu0 0
        %1569 = vperm.xlu0 %1568, %v1373
        %v1570 = vpop.permute.xlu0 %1569
        %1573 = vset.pattern.permute.xlu0 0
        %1574 = vperm.xlu0 %1573, %v1374
        %v1575 = vpop.permute.xlu0 %1574
        %v1577 = vmul.f32 %v1570, %v1141
        %v1578 = vmul.f32 %v1575, %v1156
        %1579 = vst.msk [vmem:[%s889] sm:$0xff] %vm1108, %v1577
        %1580 = vst.msk [vmem:[%s889 + $0x8] sm:$0xff] %vm1108, %v1578
        %s1581 = sand.u32 %s559, 1
        %s1582 = scalar_lea.sflag [#allocation5], %s1581
        %s1583 = sand.u32 %s559, 1
        %s1584 = smul.addr %s1583, 16
        %s1585 = scalar_lea.vmem [#allocation11], %s1584
        %s1586 = smul.u32 2, %s48
        %p1587 = scmp.lt.s32.totalorder %s1586, 3
        %s1588 = scalar_select %p1587, %s1586, 3
        %s1589 = smul.addr %s1588, 8
        %s1590 = scalar_lea.vmem %s24, %s1589
        %s1591 = sand.u32 %s611, 1
        %s1592 = scalar_lea.sflag [#allocation13], %s1591
        %s1593 = sand.u32 %s611, 1
        %s1594 = smul.addr %s1593, 16
        %s1595 = scalar_lea.vmem [#allocation12], %s1594
        // Predicated region
        $region129: #{tpu_custom_call.1} parent=111 // pred_check
          %p1596 = pneg %p569
        $region130: #{tpu_custom_call.1} parent=111 // pred_check_branch
          %1598 = sbr.rel (%p1596) target = $region132
        $region131: #{tpu_custom_call.1} parent=111 // pred_region
          %s1599 = smul.u32 2, %s48
          %1601 = vsyncadd %s1582, 0
          %s1602 = smul.addr %s1599, 8
          %s1603 = scalar_lea.hbm %s23, %s1602
          %s1604 = sshll.u32 %s1585, 4
          %s1605 = int_to_ptr.vmem [resolvable:$true] %s1604
          %s1606 = sshll.u32 %s1603, 4
          %s1607 = int_to_ptr.hbm [resolvable:$true] %s1606
          %1612 = dma.vmem_to_hbm [thread:$0]  %s1605, 256, %s1607, %s1582, 128, 128, 8
        $region132: #{tpu_custom_call.1} parent=111 // pred_fallthru
          _
        // Predicated region
        $region133: #{tpu_custom_call.1} parent=111 // pred_check
          %p1613 = pneg %p595
        $region134: #{tpu_custom_call.1} parent=111 // pred_check_branch
          %1615 = sbr.rel (%p1613) target = $region136
        $region135: #{tpu_custom_call.1} parent=111 // pred_region
          %s1616 = smul.u32 2, %s48
        $region136: #{tpu_custom_call.1} parent=111 // pred_fallthru
          _
        // Predicated region
        $region137: #{tpu_custom_call.1} parent=111 // pred_check
          %p1617 = pneg %p621
        $region138: #{tpu_custom_call.1} parent=111 // pred_check_branch
          %1619 = sbr.rel (%p1617) target = $region140
        $region139: #{tpu_custom_call.1} parent=111 // pred_region
          %s1620 = smul.u32 2, %s48
          %1622 = vsyncadd %s1592, 0
          %s1623 = smul.addr %s1620, 8
          %s1624 = scalar_lea.hbm %s25, %s1623
          %s1625 = sshll.u32 %s1595, 4
          %s1626 = int_to_ptr.vmem [resolvable:$true] %s1625
          %s1627 = sshll.u32 %s1624, 4
          %s1628 = int_to_ptr.hbm [resolvable:$true] %s1627
          %1633 = dma.vmem_to_hbm [thread:$0]  %s1626, 256, %s1628, %s1592, 128, 128, 8
        $region140: #{tpu_custom_call.1} parent=111 // pred_fallthru
          _
      $region112: #{tpu_custom_call.1} parent=5 // pred_fallthru
        _
      %p1634 = scmp.le.s32.totalorder 2, %s43
      // Predicated region
      $region141: #{tpu_custom_call.1} parent=5 // pred_check
        %p1635 = pneg %p1634
      $region142: #{tpu_custom_call.1} parent=5 // pred_check_branch
        %1637 = sbr.rel (%p1635) target = $region144
      $region143: #{tpu_custom_call.1} parent=5 // pred_region
        %s1638 = ssub.s32 %s43, 2
        // Predicated region
        $region145: #{tpu_custom_call.1} parent=143 // pred_check
          %p1639 = pneg %p575
        $region146: #{tpu_custom_call.1} parent=143 // pred_check_branch
          %1641 = sbr.rel (%p1639) target = $region148
        $region147: #{tpu_custom_call.1} parent=143 // pred_region
          %s1642 = sand.u32 %s560, 1
          %s1643 = scalar_lea.sflag [#allocation5], %s1642
          %s1644 = sand.u32 %s560, 1
          %s1645 = smul.addr %s1644, 16
          %s1646 = scalar_lea.vmem [#allocation11], %s1645
          %1648 = dma.done %s1643, 256
        $region148: #{tpu_custom_call.1} parent=143 // pred_fallthru
          _
        // Predicated region
        $region149: #{tpu_custom_call.1} parent=143 // pred_check
          %p1649 = pneg %p601
        $region150: #{tpu_custom_call.1} parent=143 // pred_check_branch
          %1651 = sbr.rel (%p1649) target = $region152
        $region151: #{tpu_custom_call.1} parent=143 // pred_region
          %s1652 = smul.u32 2, %s49
          %p1653 = scmp.lt.s32.totalorder %s1652, 3
          %s1654 = scalar_select %p1653, %s1652, 3
          %s1655 = smul.addr %s1654, 8
          %s1656 = scalar_lea.vmem %s24, %s1655
        $region152: #{tpu_custom_call.1} parent=143 // pred_fallthru
          _
        // Predicated region
        $region153: #{tpu_custom_call.1} parent=143 // pred_check
          %p1657 = pneg %p627
        $region154: #{tpu_custom_call.1} parent=143 // pred_check_branch
          %1659 = sbr.rel (%p1657) target = $region156
        $region155: #{tpu_custom_call.1} parent=143 // pred_region
          %s1660 = sand.u32 %s612, 1
          %s1661 = scalar_lea.sflag [#allocation13], %s1660
          %s1662 = sand.u32 %s612, 1
          %s1663 = smul.addr %s1662, 16
          %s1664 = scalar_lea.vmem [#allocation12], %s1663
          %1666 = dma.done %s1661, 256
        $region156: #{tpu_custom_call.1} parent=143 // pred_fallthru
          _
      $region144: #{tpu_custom_call.1} parent=5 // pred_fallthru
        _
    $region6: #{tpu_custom_call.1} parent=1 // loop_footer
      %s47 = sadd.s32 1, %s43
    $region7: #{tpu_custom_call.1} parent=1 // loop_footer_branch
      %42 = sbr.rel target = $region3
    $region8: #{tpu_custom_call.1} parent=1 // loop_exit
      _
    %1667 = vsyncpa [#allocation4], 1
    %s1668 = scalar_lea.sflag [#allocation4], 1
    %1669 = vsyncpa %s1668, 1
    %1670 = vsyncpa [#allocation7], 1
    %1671 = vsyncpa [#allocation10], 1
    %1672 = vsyncpa [#allocation5], 1
    %s1673 = scalar_lea.sflag [#allocation5], 1
    %1674 = vsyncpa %s1673, 1
    %1675 = vsyncpa [#allocation13], 1
    %s1676 = scalar_lea.sflag [#allocation13], 1
    %1677 = vsyncpa %s1676, 1

</llo_original>
